<compile_context>
chip_gen: v7x
topology: tpu7x:2x2x1
jax: 0.10.0
libtpu: 0.0.40
codegen_flags: <defaults>
</compile_context>

<pallas_src>
import math

import numpy as np
import jax
import jax.numpy as jnp
from jax.experimental import pallas as pl
from jax.experimental.pallas import tpu as pltpu

F32 = jnp.float32
BF16 = jnp.bfloat16
OUT_LANES = 128           # lane-dense output width (sliced back in the wrapper)


# --------------------------- host-side constant building ---------------------------
def _layer_consts(W, att, bias, edge_index, edge_weight, res_n_id,
                  n_src, n_dst, heads, out_c, *, fold_b=0, out_lanes=None,
                  pad_dst_rows=None):
    """Build one layer's constant matrices (numpy, computed once per graph)."""
    H, C = heads, out_c
    HC = H * C
    ei = np.asarray(edge_index)
    src, dst = ei[0], ei[1]
    E = int(src.shape[0])
    EP = int(np.ceil(E / 8) * 8)                       # sublane-align the edge dim

    dgat = np.zeros((EP, n_src), np.float32)           # dst-row gather (folds x[res_n_id])
    dgat[:E] = (np.asarray(res_n_id)[dst][:, None] == np.arange(n_src)[None, :])
    esrc = np.zeros((EP, n_src), np.float32)           # src-row gather
    esrc[:E] = (src[:, None] == np.arange(n_src)[None, :])
    edst = np.zeros((n_dst, EP), np.float32)           # scatter-add to dst nodes
    edst[:, :E] = (dst[:, None] == np.arange(n_dst)[None, :]).T
    P = np.zeros((EP, EP), np.float32)                 # same-destination matrix (= edst_t @ edst)
    P[:E, :E] = (dst[:, None] == dst[None, :])
    ewp = np.zeros((EP,), np.float32)
    ewp[:E] = np.asarray(edge_weight, np.float32)

    if fold_b and fold_b > 1:                          # fold batch into rows (v5e/v6e path)
        I = np.eye(fold_b, dtype=np.float32)
        dgat, esrc = np.kron(I, dgat), np.kron(I, esrc)
        edst, P = np.kron(I, edst), np.kron(I, P)
        ewp = np.tile(ewp, fold_b)
    if pad_dst_rows is not None and edst.shape[0] < pad_dst_rows:
        edst = np.pad(edst, ((0, pad_dst_rows - edst.shape[0]), (0, 0)))

    G = np.vstack([dgat, esrc])                        # fused gather: rows = [x_i | x_j]

    att2 = np.asarray(att, np.float32).reshape(H, 2 * C)
    ai, aj = att2[:, :C].reshape(HC), att2[:, C:].reshape(HC)
    head = np.arange(HC) // C
    bdiag = (head[:, None] == head[None, :]).astype(np.float32)
    Ai = ai[:, None] * bdiag                           # per-head logit, bcast over channels
    Aj = aj[:, None] * bdiag

    cols = C if out_lanes is None else out_lanes
    mean = np.zeros((HC, cols), np.float32)            # concat=False head mean
    mean[np.arange(HC), np.arange(HC) % C] = 1.0 / H
    biasp = np.zeros((1, cols), np.float32)
    biasp[0, :C] = np.asarray(bias, np.float32)
    ew_b = np.repeat(ewp[:, None], HC, axis=1)         # pre-broadcast edge weights (E, HC)

    bf16_entries = {"W": np.asarray(W, np.float32), "Ai": Ai, "Aj": Aj, "G": G,
                    "edst": edst, "P": P, "mean": mean}
    f32_entries = {"ew": ew_b, "bias": biasp}
    dims = {"E": G.shape[0] // 2}
    return bf16_entries, f32_entries, dims


def _pack_slab(entry_dicts, *, row_align, lanes=128):
    """Pack a list of {name: 2-D array} dicts into one (rows, 128) slab + metas."""
    metas, arrays, rows = [], [], 0
    for ent in entry_dicts:
        meta = {}
        for name, a in ent.items():
            r, c = a.shape
            assert c <= lanes
            meta[name] = (rows, r, c)
            arrays.append((rows, a))
            rows += int(np.ceil(r / row_align) * row_align)
        metas.append(meta)
    rows = max(int(np.ceil(rows / row_align) * row_align), row_align)
    slab = np.zeros((rows, lanes), np.float32)
    for off, a in arrays:
        slab[off:off + a.shape[0], :a.shape[1]] = a
    return slab, metas


# --------------------------------- kernel body ---------------------------------
def _sl(ref, meta, name):
    off, r, c = meta[name]
    return ref[pl.ds(off, r), pl.ds(0, c)]             # static slice out of the slab


def _gat_layer(x_bf, bslab, fslab, mb, mf, E):
    """One MyGATConv(concat=False) + the outer F.leaky_relu(0.01)."""
    W = _sl(bslab, mb, "W")
    Ai = _sl(bslab, mb, "Ai")
    Aj = _sl(bslab, mb, "Aj")
    G = _sl(bslab, mb, "G")
    edst = _sl(bslab, mb, "edst")
    P = _sl(bslab, mb, "P")
    mean = _sl(bslab, mb, "mean")
    ew = _sl(fslab, mf, "ew")
    bias = _sl(fslab, mf, "bias")

    xw = jnp.dot(x_bf, W, preferred_element_type=F32)                    # (Ns, HC)
    xij = jnp.dot(G, xw.astype(BF16), preferred_element_type=F32)        # (2E, HC) fused gather
    x_i, x_j = xij[:E], xij[E:]

    # attention logits: att folded into per-head block matrices Ai/Aj (MXU, not VPU)
    logit = (jnp.dot(x_i.astype(BF16), Ai, preferred_element_type=F32) +
             jnp.dot(x_j.astype(BF16), Aj, preferred_element_type=F32))  # (E, HC) head-bcast
    alpha = logit * ew                                                   # * edge_weight (pre-bcast)
    alpha = jnp.where(alpha > 0, alpha, 0.2 * alpha)                     # leaky_relu(0.2)

    # segment softmax over edges sharing a destination (global-max shift is exact
    # per segment at these magnitudes).
    # TODO(synk): switch to a per-segment max when scaling to large graphs.
    amax = jnp.max(alpha, keepdims=True)
    exp_a = jnp.exp(alpha - amax)                                        # f32, EUP
    sum_e = jnp.dot(P, exp_a.astype(BF16), preferred_element_type=F32)   # per-edge segment sum
    alpha_n = exp_a * pl.reciprocal(sum_e + 1e-16, approx=True)
    # TODO(synk): F.dropout(p=0) is an identity and is therefore omitted.

    msg = (x_j * alpha_n).astype(BF16)                                   # messages
    aggr = jnp.dot(edst, msg, preferred_element_type=F32)                # scatter-add to dst
    out = jnp.dot(aggr.astype(BF16), mean, preferred_element_type=F32) + bias
    return jnp.where(out > 0, out, 0.01 * out)                           # outer leaky_relu(0.01)


def _make_kernel(bmetas, fmetas, dims):
    mb1, mb2 = bmetas
    mf1, mf2 = fmetas
    d1, d2 = dims

    def kernel(x_ref, bslab_ref, fslab_ref, o_ref):
        h1 = _gat_layer(x_ref[...], bslab_ref, fslab_ref, mb1, mf1, d1["E"])
        out = _gat_layer(h1.astype(BF16), bslab_ref, fslab_ref, mb2, mf2, d2["E"])
        o_ref[...] = out                      # lane-dense (8, 128) store
    return kernel


# ------------------------------- builder / wrapper -------------------------------
def _default_fold_batch():
    """v5e/v6e (1 TC): fold batch into rows.  v7x (2 TCs): keep the parallel grid."""
    try:
        kind = jax.devices()[0].device_kind.lower()
    except Exception:
        return True
    return "7" not in kind


def build_gatnet_forward(params, graph, *, n0, batch, heads=4, fold_batch=None):
    """Precompute all graph/parameter constants once; return a jitted fn of X only."""
    if fold_batch is None:
        fold_batch = _default_fold_batch()

    (W1, att1, b1), (W2, att2, b2) = params
    (ei0, ew0, rn0, n1), (ei1, ew1, rn1, n2) = graph
    fin = int(np.asarray(W1).shape[0])
    c1 = int(np.asarray(W1).shape[1]) // heads
    c2 = int(np.asarray(W2).shape[1]) // heads

    fold_b = batch if fold_batch else 0
    nd2_rows = batch * n2 if fold_batch else n2
    nd2_rows_pad = int(np.ceil(nd2_rows / 8) * 8)      # sublane-aligned output rows

    b1e, f1e, d1 = _layer_consts(W1, att1, b1, ei0, ew0, rn0, n0, n1, heads, c1,
                                 fold_b=fold_b, out_lanes=None)
    b2e, f2e, d2 = _layer_consts(W2, att2, b2, ei1, ew1, rn1, n1, n2, heads, c2,
                                 fold_b=fold_b, out_lanes=OUT_LANES,
                                 pad_dst_rows=nd2_rows_pad)

    bslab_np, bmetas = _pack_slab([b1e, b2e], row_align=16)   # bf16 sublane tile = 16
    fslab_np, fmetas = _pack_slab([f1e, f2e], row_align=8)
    bslab = jnp.asarray(bslab_np).astype(BF16)
    fslab = jnp.asarray(fslab_np)                              # f32

    kernel = _make_kernel(bmetas, fmetas, (d1, d2))
    cparams = pltpu.CompilerParams(
        dimension_semantics=(("arbitrary",) if fold_batch else ("parallel",)),
        vmem_limit_bytes=32 * 1024 * 1024)

    if fold_batch:
        call = pl.pallas_call(
            kernel,
            out_shape=jax.ShapeDtypeStruct((nd2_rows_pad, OUT_LANES), F32),
            grid_spec=pl.GridSpec(
                grid=(1,),
                in_specs=[pl.BlockSpec((batch * n0, fin), lambda b: (0, 0)),
                          pl.BlockSpec(bslab.shape, lambda b: (0, 0)),
                          pl.BlockSpec(fslab.shape, lambda b: (0, 0))],
                out_specs=pl.BlockSpec((nd2_rows_pad, OUT_LANES), lambda b: (0, 0))),
            compiler_params=cparams)

        def fwd(X):
            xb = X.astype(BF16).reshape(batch * n0, fin)
            out = call(xb, bslab, fslab)
            return out[:batch * n2].reshape(batch, n2, OUT_LANES)[:, :, :c2]
    else:
        call = pl.pallas_call(
            kernel,
            out_shape=jax.ShapeDtypeStruct((batch, nd2_rows_pad, OUT_LANES), F32),
            grid_spec=pl.GridSpec(
                grid=(batch,),
                in_specs=[pl.BlockSpec((None, n0, fin), lambda b: (b, 0, 0)),
                          pl.BlockSpec(bslab.shape, lambda b: (0, 0)),
                          pl.BlockSpec(fslab.shape, lambda b: (0, 0))],
                out_specs=pl.BlockSpec((None, nd2_rows_pad, OUT_LANES),
                                       lambda b: (b, 0, 0))),
            compiler_params=cparams)

        def fwd(X):
            out = call(X.astype(BF16), bslab, fslab)
            return out[:, :n2, :c2]

    return jax.jit(fwd)


# ----------------------------- pure-JAX reference ------------------------------
def gat_conv_ref(x_src, x_dst, W, att, bias, edge_index, edge_weight, heads, out_c):
    H, C = heads, out_c
    B = x_src.shape[0]
    Nd = x_dst.shape[1]
    xw_src = jnp.einsum('bnf,fk->bnk', x_src, W)
    xw_dst = jnp.einsum('bnf,fk->bnk', x_dst, W)
    src, dst = edge_index[0], edge_index[1]
    x_j = xw_src[:, src, :].reshape(B, -1, H, C)
    x_i = xw_dst[:, dst, :].reshape(B, -1, H, C)
    att4 = att.reshape(1, 1, H, 2 * C)
    alpha = (jnp.concatenate([x_i, x_j], axis=-1) * att4).sum(-1)
    alpha = alpha * edge_weight[None, :, None]
    alpha = jnp.where(alpha > 0, alpha, 0.2 * alpha)
    alpha_t = alpha.transpose(1, 0, 2)
    amax = jax.ops.segment_max(alpha_t, dst, num_segments=Nd)
    ex = jnp.exp(alpha_t - amax[dst])
    esum = jax.ops.segment_sum(ex, dst, num_segments=Nd)
    alpha_n = (ex / (esum[dst] + 1e-16)).transpose(1, 0, 2)
    msg = x_j * alpha_n[..., None]
    aggr = jax.ops.segment_sum(msg.transpose(1, 0, 2, 3), dst, num_segments=Nd)
    aggr = aggr.transpose(1, 0, 2, 3)
    out = aggr.mean(axis=2) + bias[None, None, :]
    return jnp.where(out > 0, out, 0.01 * out)


if __name__ == "__main__":
    key = jax.random.PRNGKey(0)
    B, N0, Fin = 2, 8, 4        # batch, #source nodes of layer 1, in_channels
    HEADS = 4
    HID = 16                    # conv1 out_channels
    OUT = 8                     # conv2 out_channels
    N1, N2 = 6, 4               # target-node counts of layer 1 / layer 2
    E0, E1 = 16, 12             # edge counts

    ks = jax.random.split(key, 12)

    def glorot(k, shape):
        fan_in, fan_out = shape[0], shape[-1]
        lim = math.sqrt(6.0 / (fan_in + fan_out))
        return jax.random.uniform(k, shape, F32, -lim, lim)

    # deterministic synthetic parameters (shapes from MyGATConv.__init__)
    W1 = glorot(ks[0], (Fin, HEADS * HID))
    att1 = glorot(ks[1], (1, 1, HEADS, 2 * HID))
    b1 = 0.1 * jax.random.normal(ks[2], (HID,), F32)
    W2 = glorot(ks[3], (HID, HEADS * OUT))
    att2 = glorot(ks[4], (1, 1, HEADS, 2 * OUT))
    b2 = 0.1 * jax.random.normal(ks[5], (OUT,), F32)

    # input features and synthetic graph structure `g`
    X = jax.random.normal(ks[6], (B, N0, Fin), F32)

    src0 = jax.random.randint(ks[7], (E0,), 0, N0)
    dst0 = jnp.arange(E0, dtype=jnp.int32) % N1
    edge_index0 = jnp.stack([src0, dst0]).astype(jnp.int32)          # (2, E0)
    ew0 = jax.random.uniform(ks[8], (E0,), F32, 0.5, 1.5)

    src1 = jax.random.randint(ks[9], (E1,), 0, N1)
    dst1 = jnp.arange(E1, dtype=jnp.int32) % N2
    edge_index1 = jnp.stack([src1, dst1]).astype(jnp.int32)          # (2, E1)
    ew1 = jax.random.uniform(ks[10], (E1,), F32, 0.5, 1.5)

    # res_n_id: destination nodes are a (non-trivial) subset of the source nodes
    res_n_id0 = jnp.sort(jax.random.permutation(ks[11], N0)[:N1]).astype(jnp.int32)
    res_n_id1 = jnp.sort(jax.random.permutation(jax.random.PRNGKey(7), N1)[:N2]).astype(jnp.int32)

    params = ((W1, att1, b1), (W2, att2, b2))
    graph = ((edge_index0, ew0, res_n_id0, N1), (edge_index1, ew1, res_n_id1, N2))

    # pure-JAX (f32) segment-op reference
    h1_ref = gat_conv_ref(X, X[:, res_n_id0, :], W1, att1, b1, edge_index0, ew0, HEADS, HID)
    out_ref = gat_conv_ref(h1_ref, h1_ref[:, res_n_id1, :], W2, att2, b2,
                           edge_index1, ew1, HEADS, OUT)

    # Build & verify BOTH per-generation variants (both valid on any TPU; the
    # default fold_batch=None auto-selects: fold on v5e/v6e, parallel grid on v7x).
    for fold in (True, False):
        fwd = build_gatnet_forward(params, graph, n0=N0, batch=B, heads=HEADS,
                                   fold_batch=fold)
        out = jax.block_until_ready(fwd(X))
        assert out.shape == (B, N2, OUT)
        err = float(jnp.max(jnp.abs(out - out_ref)))
        assert jnp.allclose(out, out_ref, atol=5e-2, rtol=5e-2), (fold, err)

    print("KERNEL_OK")
</pallas_src>

<mosaic_0001>
module attributes {stable_mosaic.version = 11 : i64} {
  func.func @kernel(%arg0: i32, %arg1: memref<16x4xbf16, #tpu.memory_space<vmem>>, %arg2: memref<544x128xbf16, #tpu.memory_space<vmem>>, %arg3: memref<80x128xf32, #tpu.memory_space<vmem>>, %arg4: memref<8x128xf32, #tpu.memory_space<vmem>>) attributes {dimension_semantics = [#tpu.dimension_semantics<arbitrary>], iteration_bounds = array<i64: 1>, scalar_prefetch = 0 : i64, scratch_operands = 0 : i64, tpu.core_type = #tpu.core_type<tc>, window_params = [{pipeline_mode = #tpu.pipeline_mode<synchronous>, transform_indices = @transform_0, window_bounds = array<i64: 16, 4>}, {pipeline_mode = #tpu.pipeline_mode<synchronous>, transform_indices = @transform_1, window_bounds = array<i64: 544, 128>}, {pipeline_mode = #tpu.pipeline_mode<synchronous>, transform_indices = @transform_2, window_bounds = array<i64: 80, 128>}, {pipeline_mode = #tpu.pipeline_mode<synchronous>, transform_indices = @transform_3, window_bounds = array<i64: 8, 128>}]} {
    %c0 = arith.constant 0 : index
    %c0_0 = arith.constant 0 : index
    %0 = vector.load %arg1[%c0, %c0_0] : memref<16x4xbf16, #tpu.memory_space<vmem>>, vector<16x4xbf16>
    %c0_1 = arith.constant 0 : index
    %c0_2 = arith.constant 0 : index
    %1 = vector.load %arg2[%c0_1, %c0_2] : memref<544x128xbf16, #tpu.memory_space<vmem>>, vector<4x64xbf16>
    %c16 = arith.constant 16 : index
    %c0_3 = arith.constant 0 : index
    %2 = vector.load %arg2[%c16, %c0_3] : memref<544x128xbf16, #tpu.memory_space<vmem>>, vector<64x64xbf16>
    %c80 = arith.constant 80 : index
    %c0_4 = arith.constant 0 : index
    %3 = vector.load %arg2[%c80, %c0_4] : memref<544x128xbf16, #tpu.memory_space<vmem>>, vector<64x64xbf16>
    %c144 = arith.constant 144 : index
    %c0_5 = arith.constant 0 : index
    %4 = vector.load %arg2[%c144, %c0_5] : memref<544x128xbf16, #tpu.memory_space<vmem>>, vector<64x16xbf16>
    %c208 = arith.constant 208 : index
    %c0_6 = arith.constant 0 : index
    %5 = vector.load %arg2[%c208, %c0_6] : memref<544x128xbf16, #tpu.memory_space<vmem>>, vector<12x32xbf16>
    %c224 = arith.constant 224 : index
    %c0_7 = arith.constant 0 : index
    %6 = vector.load %arg2[%c224, %c0_7] : memref<544x128xbf16, #tpu.memory_space<vmem>>, vector<32x32xbf16>
    %c256 = arith.constant 256 : index
    %c0_8 = arith.constant 0 : index
    %7 = vector.load %arg2[%c256, %c0_8] : memref<544x128xbf16, #tpu.memory_space<vmem>>, vector<64x16xbf16>
    %c0_9 = arith.constant 0 : index
    %c0_10 = arith.constant 0 : index
    %8 = vector.load %arg3[%c0_9, %c0_10] : memref<80x128xf32, #tpu.memory_space<vmem>>, vector<32x64xf32>
    %c32 = arith.constant 32 : index
    %c0_11 = arith.constant 0 : index
    %9 = vector.load %arg3[%c32, %c0_11] : memref<80x128xf32, #tpu.memory_space<vmem>>, vector<1x16xf32>
    %cst = arith.constant dense<0.000000e+00> : vector<16x64xf32>
    %10 = tpu.matmul %0, %1, %cst {dimension_numbers = #tpu.dot_dimension_numbers<[1], [0], [0], [1], [0, 0, 1, 1], [], []>} : vector<16x4xbf16>, vector<4x64xbf16>, vector<16x64xf32> -> vector<16x64xf32>
    %11 = arith.truncf %10 : vector<16x64xf32> to vector<16x64xbf16>
    %cst_12 = arith.constant dense<0.000000e+00> : vector<64x64xf32>
    %12 = tpu.matmul %4, %11, %cst_12 {dimension_numbers = #tpu.dot_dimension_numbers<[1], [0], [0], [1], [0, 0, 1, 1], [], []>} : vector<64x16xbf16>, vector<16x64xbf16>, vector<64x64xf32> -> vector<64x64xf32>
    %13 = vector.extract_strided_slice %12 {offsets = [0, 0], sizes = [32, 64], strides = [1, 1]} : vector<64x64xf32> to vector<32x64xf32>
    %14 = vector.extract_strided_slice %12 {offsets = [32, 0], sizes = [32, 64], strides = [1, 1]} : vector<64x64xf32> to vector<32x64xf32>
    %15 = arith.truncf %13 : vector<32x64xf32> to vector<32x64xbf16>
    %cst_13 = arith.constant dense<0.000000e+00> : vector<32x64xf32>
    %16 = tpu.matmul %15, %2, %cst_13 {dimension_numbers = #tpu.dot_dimension_numbers<[1], [0], [0], [1], [0, 0, 1, 1], [], []>} : vector<32x64xbf16>, vector<64x64xbf16>, vector<32x64xf32> -> vector<32x64xf32>
    %17 = arith.truncf %14 : vector<32x64xf32> to vector<32x64xbf16>
    %cst_14 = arith.constant dense<0.000000e+00> : vector<32x64xf32>
    %18 = tpu.matmul %17, %3, %cst_14 {dimension_numbers = #tpu.dot_dimension_numbers<[1], [0], [0], [1], [0, 0, 1, 1], [], []>} : vector<32x64xbf16>, vector<64x64xbf16>, vector<32x64xf32> -> vector<32x64xf32>
    %19 = arith.addf %16, %18 : vector<32x64xf32>
    %20 = arith.mulf %19, %8 : vector<32x64xf32>
    %cst_15 = arith.constant 0.000000e+00 : f32
    %21 = vector.broadcast %cst_15 : f32 to vector<32x64xf32>
    %22 = arith.cmpf ogt, %20, %21 : vector<32x64xf32>
    %cst_16 = arith.constant 2.000000e-01 : f32
    %23 = vector.broadcast %cst_16 : f32 to vector<32x64xf32>
    %24 = arith.mulf %23, %20 : vector<32x64xf32>
    %25 = arith.select %22, %20, %24 : vector<32x64xi1>, vector<32x64xf32>
    %26 = vector.shape_cast %25 : vector<32x64xf32> to vector<1x32x64xf32>
    %cst_17 = arith.constant dense<0xFF800000> : vector<1xf32>
    %27 = vector.multi_reduction <maximumf>, %26, %cst_17 [1, 2] : vector<1x32x64xf32> to vector<1xf32>
    %28 = vector.shape_cast %27 : vector<1xf32> to vector<1x1x1xf32>
    %29 = vector.extract %28[0, 0, 0] : f32 from vector<1x1x1xf32>
    %30 = vector.broadcast %29 : f32 to vector<1x1xf32>
    %31 = vector.broadcast %30 : vector<1x1xf32> to vector<32x64xf32>
    %32 = arith.subf %25, %31 : vector<32x64xf32>
    %33 = math.exp %32 : vector<32x64xf32>
    %34 = arith.truncf %33 : vector<32x64xf32> to vector<32x64xbf16>
    %cst_18 = arith.constant dense<0.000000e+00> : vector<32x64xf32>
    %35 = tpu.matmul %6, %34, %cst_18 {dimension_numbers = #tpu.dot_dimension_numbers<[1], [0], [0], [1], [0, 0, 1, 1], [], []>} : vector<32x32xbf16>, vector<32x64xbf16>, vector<32x64xf32> -> vector<32x64xf32>
    %cst_19 = arith.constant 1.000000e-16 : f32
    %36 = vector.broadcast %cst_19 : f32 to vector<32x64xf32>
    %37 = arith.addf %35, %36 : vector<32x64xf32>
    %38 = tpu.reciprocal %37 {approx = true} : vector<32x64xf32> -> vector<32x64xf32>
    %39 = arith.mulf %33, %38 : vector<32x64xf32>
    %40 = arith.mulf %14, %39 : vector<32x64xf32>
    %41 = arith.truncf %40 : vector<32x64xf32> to vector<32x64xbf16>
    %cst_20 = arith.constant dense<0.000000e+00> : vector<12x64xf32>
    %42 = tpu.matmul %5, %41, %cst_20 {dimension_numbers = #tpu.dot_dimension_numbers<[1], [0], [0], [1], [0, 0, 1, 1], [], []>} : vector<12x32xbf16>, vector<32x64xbf16>, vector<12x64xf32> -> vector<12x64xf32>
    %43 = arith.truncf %42 : vector<12x64xf32> to vector<12x64xbf16>
    %cst_21 = arith.constant dense<0.000000e+00> : vector<12x16xf32>
    %44 = tpu.matmul %43, %7, %cst_21 {dimension_numbers = #tpu.dot_dimension_numbers<[1], [0], [0], [1], [0, 0, 1, 1], [], []>} : vector<12x64xbf16>, vector<64x16xbf16>, vector<12x16xf32> -> vector<12x16xf32>
    %45 = vector.broadcast %9 : vector<1x16xf32> to vector<12x16xf32>
    %46 = arith.addf %44, %45 : vector<12x16xf32>
    %cst_22 = arith.constant 0.000000e+00 : f32
    %47 = vector.broadcast %cst_22 : f32 to vector<12x16xf32>
    %48 = arith.cmpf ogt, %46, %47 : vector<12x16xf32>
    %cst_23 = arith.constant 0.00999999977 : f32
    %49 = vector.broadcast %cst_23 : f32 to vector<12x16xf32>
    %50 = arith.mulf %49, %46 : vector<12x16xf32>
    %51 = arith.select %48, %46, %50 : vector<12x16xi1>, vector<12x16xf32>
    %52 = arith.truncf %51 : vector<12x16xf32> to vector<12x16xbf16>
    %c320 = arith.constant 320 : index
    %c0_24 = arith.constant 0 : index
    %53 = vector.load %arg2[%c320, %c0_24] : memref<544x128xbf16, #tpu.memory_space<vmem>>, vector<16x32xbf16>
    %c336 = arith.constant 336 : index
    %c0_25 = arith.constant 0 : index
    %54 = vector.load %arg2[%c336, %c0_25] : memref<544x128xbf16, #tpu.memory_space<vmem>>, vector<32x32xbf16>
    %c368 = arith.constant 368 : index
    %c0_26 = arith.constant 0 : index
    %55 = vector.load %arg2[%c368, %c0_26] : memref<544x128xbf16, #tpu.memory_space<vmem>>, vector<32x32xbf16>
    %c400 = arith.constant 400 : index
    %c0_27 = arith.constant 0 : index
    %56 = vector.load %arg2[%c400, %c0_27] : memref<544x128xbf16, #tpu.memory_space<vmem>>, vector<64x12xbf16>
    %c464 = arith.constant 464 : index
    %c0_28 = arith.constant 0 : index
    %57 = vector.load %arg2[%c464, %c0_28] : memref<544x128xbf16, #tpu.memory_space<vmem>>, vector<8x32xbf16>
    %c480 = arith.constant 480 : index
    %c0_29 = arith.constant 0 : index
    %58 = vector.load %arg2[%c480, %c0_29] : memref<544x128xbf16, #tpu.memory_space<vmem>>, vector<32x32xbf16>
    %c512 = arith.constant 512 : index
    %c0_30 = arith.constant 0 : index
    %59 = vector.load %arg2[%c512, %c0_30] : memref<544x128xbf16, #tpu.memory_space<vmem>>, vector<32x128xbf16>
    %c40 = arith.constant 40 : index
    %c0_31 = arith.constant 0 : index
    %60 = vector.load %arg3[%c40, %c0_31] : memref<80x128xf32, #tpu.memory_space<vmem>>, vector<32x32xf32>
    %c72 = arith.constant 72 : index
    %c0_32 = arith.constant 0 : index
    %61 = vector.load %arg3[%c72, %c0_32] : memref<80x128xf32, #tpu.memory_space<vmem>>, vector<1x128xf32>
    %cst_33 = arith.constant dense<0.000000e+00> : vector<12x32xf32>
    %62 = tpu.matmul %52, %53, %cst_33 {dimension_numbers = #tpu.dot_dimension_numbers<[1], [0], [0], [1], [0, 0, 1, 1], [], []>} : vector<12x16xbf16>, vector<16x32xbf16>, vector<12x32xf32> -> vector<12x32xf32>
    %63 = arith.truncf %62 : vector<12x32xf32> to vector<12x32xbf16>
    %cst_34 = arith.constant dense<0.000000e+00> : vector<64x32xf32>
    %64 = tpu.matmul %56, %63, %cst_34 {dimension_numbers = #tpu.dot_dimension_numbers<[1], [0], [0], [1], [0, 0, 1, 1], [], []>} : vector<64x12xbf16>, vector<12x32xbf16>, vector<64x32xf32> -> vector<64x32xf32>
    %65 = vector.extract_strided_slice %64 {offsets = [0, 0], sizes = [32, 32], strides = [1, 1]} : vector<64x32xf32> to vector<32x32xf32>
    %66 = vector.extract_strided_slice %64 {offsets = [32, 0], sizes = [32, 32], strides = [1, 1]} : vector<64x32xf32> to vector<32x32xf32>
    %67 = arith.truncf %65 : vector<32x32xf32> to vector<32x32xbf16>
    %cst_35 = arith.constant dense<0.000000e+00> : vector<32x32xf32>
    %68 = tpu.matmul %67, %54, %cst_35 {dimension_numbers = #tpu.dot_dimension_numbers<[1], [0], [0], [1], [0, 0, 1, 1], [], []>} : vector<32x32xbf16>, vector<32x32xbf16>, vector<32x32xf32> -> vector<32x32xf32>
    %69 = arith.truncf %66 : vector<32x32xf32> to vector<32x32xbf16>
    %cst_36 = arith.constant dense<0.000000e+00> : vector<32x32xf32>
    %70 = tpu.matmul %69, %55, %cst_36 {dimension_numbers = #tpu.dot_dimension_numbers<[1], [0], [0], [1], [0, 0, 1, 1], [], []>} : vector<32x32xbf16>, vector<32x32xbf16>, vector<32x32xf32> -> vector<32x32xf32>
    %71 = arith.addf %68, %70 : vector<32x32xf32>
    %72 = arith.mulf %71, %60 : vector<32x32xf32>
    %cst_37 = arith.constant 0.000000e+00 : f32
    %73 = vector.broadcast %cst_37 : f32 to vector<32x32xf32>
    %74 = arith.cmpf ogt, %72, %73 : vector<32x32xf32>
    %cst_38 = arith.constant 2.000000e-01 : f32
    %75 = vector.broadcast %cst_38 : f32 to vector<32x32xf32>
    %76 = arith.mulf %75, %72 : vector<32x32xf32>
    %77 = arith.select %74, %72, %76 : vector<32x32xi1>, vector<32x32xf32>
    %78 = vector.shape_cast %77 : vector<32x32xf32> to vector<1x32x32xf32>
    %cst_39 = arith.constant dense<0xFF800000> : vector<1xf32>
    %79 = vector.multi_reduction <maximumf>, %78, %cst_39 [1, 2] : vector<1x32x32xf32> to vector<1xf32>
    %80 = vector.shape_cast %79 : vector<1xf32> to vector<1x1x1xf32>
    %81 = vector.extract %80[0, 0, 0] : f32 from vector<1x1x1xf32>
    %82 = vector.broadcast %81 : f32 to vector<1x1xf32>
    %83 = vector.broadcast %82 : vector<1x1xf32> to vector<32x32xf32>
    %84 = arith.subf %77, %83 : vector<32x32xf32>
    %85 = math.exp %84 : vector<32x32xf32>
    %86 = arith.truncf %85 : vector<32x32xf32> to vector<32x32xbf16>
    %cst_40 = arith.constant dense<0.000000e+00> : vector<32x32xf32>
    %87 = tpu.matmul %58, %86, %cst_40 {dimension_numbers = #tpu.dot_dimension_numbers<[1], [0], [0], [1], [0, 0, 1, 1], [], []>} : vector<32x32xbf16>, vector<32x32xbf16>, vector<32x32xf32> -> vector<32x32xf32>
    %cst_41 = arith.constant 1.000000e-16 : f32
    %88 = vector.broadcast %cst_41 : f32 to vector<32x32xf32>
    %89 = arith.addf %87, %88 : vector<32x32xf32>
    %90 = tpu.reciprocal %89 {approx = true} : vector<32x32xf32> -> vector<32x32xf32>
    %91 = arith.mulf %85, %90 : vector<32x32xf32>
    %92 = arith.mulf %66, %91 : vector<32x32xf32>
    %93 = arith.truncf %92 : vector<32x32xf32> to vector<32x32xbf16>
    %cst_42 = arith.constant dense<0.000000e+00> : vector<8x32xf32>
    %94 = tpu.matmul %57, %93, %cst_42 {dimension_numbers = #tpu.dot_dimension_numbers<[1], [0], [0], [1], [0, 0, 1, 1], [], []>} : vector<8x32xbf16>, vector<32x32xbf16>, vector<8x32xf32> -> vector<8x32xf32>
    %95 = arith.truncf %94 : vector<8x32xf32> to vector<8x32xbf16>
    %cst_43 = arith.constant dense<0.000000e+00> : vector<8x128xf32>
    %96 = tpu.matmul %95, %59, %cst_43 {dimension_numbers = #tpu.dot_dimension_numbers<[1], [0], [0], [1], [0, 0, 1, 1], [], []>} : vector<8x32xbf16>, vector<32x128xbf16>, vector<8x128xf32> -> vector<8x128xf32>
    %97 = vector.broadcast %61 : vector<1x128xf32> to vector<8x128xf32>
    %98 = arith.addf %96, %97 : vector<8x128xf32>
    %cst_44 = arith.constant 0.000000e+00 : f32
    %99 = vector.broadcast %cst_44 : f32 to vector<8x128xf32>
    %100 = arith.cmpf ogt, %98, %99 : vector<8x128xf32>
    %cst_45 = arith.constant 0.00999999977 : f32
    %101 = vector.broadcast %cst_45 : f32 to vector<8x128xf32>
    %102 = arith.mulf %101, %98 : vector<8x128xf32>
    %103 = arith.select %100, %98, %102 : vector<8x128xi1>, vector<8x128xf32>
    %c0_46 = arith.constant 0 : index
    %c0_47 = arith.constant 0 : index
    %104 = vector.load %arg4[%c0_46, %c0_47] : memref<8x128xf32, #tpu.memory_space<vmem>>, vector<8x128xf32>
    tpu.vector_store %arg4[%c0_46, %c0_47], %103 {strides = array<i32>} : memref<8x128xf32, #tpu.memory_space<vmem>>, vector<8x128xf32>,
    return
  }
  func.func @transform_0(%arg0: i32) -> (i32, i32) {
    %c0_i32 = arith.constant 0 : i32
    %c0_i32_0 = arith.constant 0 : i32
    %c0_i32_1 = arith.constant 0 : i32
    return %c0_i32, %c0_i32_0 : i32, i32
  }
  func.func @transform_1(%arg0: i32) -> (i32, i32) {
    %c0_i32 = arith.constant 0 : i32
    %c0_i32_0 = arith.constant 0 : i32
    %c0_i32_1 = arith.constant 0 : i32
    return %c0_i32, %c0_i32_0 : i32, i32
  }
  func.func @transform_2(%arg0: i32) -> (i32, i32) {
    %c0_i32 = arith.constant 0 : i32
    %c0_i32_0 = arith.constant 0 : i32
    %c0_i32_1 = arith.constant 0 : i32
    return %c0_i32, %c0_i32_0 : i32, i32
  }
  func.func @transform_3(%arg0: i32) -> (i32, i32) {
    %c0_i32 = arith.constant 0 : i32
    %c0_i32_0 = arith.constant 0 : i32
    %c0_i32_1 = arith.constant 0 : i32
    return %c0_i32, %c0_i32_0 : i32, i32
  }
}

</mosaic_0001>

<llo_original>
// kernel: fwd.1
$region0: #{fwd.1}
  #allocation0 [shape = 'u32[]', space=smem, size = 0x4, offset = 0x4, fixed_abs, tag = 'smem constant byte address 0x4 - core index']
  #allocation1 [shape = 'u32[144,128]{1,0:T(1,128)}', space=vmem, size = 0x12000, scoped, tag = 'internal scratch']
  %s0 = inlined_call_operand.vmem [shape: bf16[16,4], index: 0, kind: input, shape index: {}]
  %s1 = inlined_call_operand.hbm [shape: bf16[544,128], index: 1, kind: input, shape index: {}]
  %s2 = inlined_call_operand.hbm [shape: f32[80,128], index: 2, kind: input, shape index: {}]
  %s3 = inlined_call_operand.hbm [shape: f32[8,128], index: 3, kind: output, shape index: {}]
  %s4 = sld [smem:[#allocation0]]
  $region30: #{fwd.1} parent=0
    _
  %s6 = ssub.s32 1, %s4
  %s7 = scalar_select 0, %s6, %s4
  $region1: #{fwd.1} parent=0
    #allocation2 [shape = 'u8[139264]{0}', space=vmem, size = 0x22000, scoped, tag = 'input window, operand 1, single buffered']
    #allocation3 [shape = 's32[1]{0}', space=sflag, size = 0x4, scoped, tag = 'scoped memory for fwd.1']
    #allocation4 [shape = 's32[1]{0}', space=sflag, size = 0x4, scoped, tag = 'scoped memory for fwd.1']
    #allocation5 [shape = 'u8[40960]{0}', space=vmem, size = 0xa000, scoped, tag = 'input window, operand 2, single buffered']
    #allocation6 [shape = 's32[1]{0}', space=sflag, size = 0x4, scoped, tag = 'scoped memory for fwd.1']
    #allocation7 [shape = 'u8[4096]{0}', space=vmem, size = 0x1000, scoped, tag = 'output window, operand 0, single buffered']
    %8 = vsyncpa [#allocation3], 0
    %9 = vsyncpa [#allocation6], 0
    %10 = vsyncpa [#allocation4], 0
    // Predicated region
    $region2: #{fwd.1} parent=1 // pred_check
      _
    $region3: #{fwd.1} parent=1 // pred_check_branch
      %12 = sbr.rel (0) target = $region5
    $region4: #{fwd.1} parent=1 // pred_region
      _
    $region5: #{fwd.1} parent=1 // pred_fallthru
      _
    // Predicated region
    $region6: #{fwd.1} parent=1 // pred_check
      _
    $region7: #{fwd.1} parent=1 // pred_check_branch
      %14 = sbr.rel (0) target = $region9
    $region8: #{fwd.1} parent=1 // pred_region
      %s16 = ssub.s32 4352, 4352
      %17 = vsyncadd [#allocation3], %s16
      %s18 = sshll.u32 [#allocation2], 4
      %s19 = int_to_ptr.vmem [resolvable:$true] %s18
      %24 = dma.hbm_to_vmem [thread:$0]  %s1, 4352, %s19, [#allocation3], 64, 64, 4
    $region9: #{fwd.1} parent=1 // pred_fallthru
      _
    // Predicated region
    $region10: #{fwd.1} parent=1 // pred_check
      _
    $region11: #{fwd.1} parent=1 // pred_check_branch
      %26 = sbr.rel (0) target = $region13
    $region12: #{fwd.1} parent=1 // pred_region
      %s28 = ssub.s32 1280, 1280
      %29 = vsyncadd [#allocation6], %s28
      %s30 = sshll.u32 [#allocation5], 4
      %s31 = int_to_ptr.vmem [resolvable:$true] %s30
      %36 = dma.hbm_to_vmem [thread:$0]  %s2, 1280, %s31, [#allocation6], 128, 128, 8
    $region13: #{fwd.1} parent=1 // pred_fallthru
      _
    // Predicated region
    $region14: #{fwd.1} parent=1 // pred_check
      _
    $region15: #{fwd.1} parent=1 // pred_check_branch
      %38 = sbr.rel (0) target = $region17
    $region16: #{fwd.1} parent=1 // pred_region
      %39 = dma.done [#allocation3], 4352
    $region17: #{fwd.1} parent=1 // pred_fallthru
      _
    // Predicated region
    $region18: #{fwd.1} parent=1 // pred_check
      _
    $region19: #{fwd.1} parent=1 // pred_check_branch
      %41 = sbr.rel (0) target = $region21
    $region20: #{fwd.1} parent=1 // pred_region
      %42 = dma.done [#allocation6], 1280
    $region21: #{fwd.1} parent=1 // pred_fallthru
      _
    %v44 = vld [vmem:[%s0] sm:$0xf]
    %v45 = vld [vmem:[%s0 + $0x4] sm:$0xf]
    %v46 = vld [vmem:[#allocation2] sm:$0x3]
    %v47 = vld [vmem:[#allocation2 + $0x8] sm:$0xf]
    %v48 = vld [vmem:[#allocation2 + $0xc] sm:$0xf]
    %v49 = vld [vmem:[#allocation2 + $0x10] sm:$0xf]
    %v50 = vld [vmem:[#allocation2 + $0x14] sm:$0xf]
    %v51 = vld [vmem:[#allocation2 + $0x18] sm:$0xf]
    %v52 = vld [vmem:[#allocation2 + $0x1c] sm:$0xf]
    %v53 = vld [vmem:[#allocation2 + $0x20] sm:$0xf]
    %v54 = vld [vmem:[#allocation2 + $0x24] sm:$0xf]
    %v55 = vld [vmem:[#allocation2 + $0x28] sm:$0xf]
    %v56 = vld [vmem:[#allocation2 + $0x2c] sm:$0xf]
    %v57 = vld [vmem:[#allocation2 + $0x30] sm:$0xf]
    %v58 = vld [vmem:[#allocation2 + $0x34] sm:$0xf]
    %v59 = vld [vmem:[#allocation2 + $0x38] sm:$0xf]
    %v60 = vld [vmem:[#allocation2 + $0x3c] sm:$0xf]
    %v61 = vld [vmem:[#allocation2 + $0x40] sm:$0xf]
    %v62 = vld [vmem:[#allocation2 + $0x44] sm:$0xf]
    %v63 = vld [vmem:[#allocation2 + $0x48] sm:$0xf]
    %v64 = vld [vmem:[#allocation2 + $0x4c] sm:$0xf]
    %v65 = vld [vmem:[#allocation2 + $0x50] sm:$0xf]
    %v66 = vld [vmem:[#allocation2 + $0x54] sm:$0xf]
    %v67 = vld [vmem:[#allocation2 + $0x58] sm:$0xf]
    %v68 = vld [vmem:[#allocation2 + $0x5c] sm:$0xf]
    %v69 = vld [vmem:[#allocation2 + $0x60] sm:$0xf]
    %v70 = vld [vmem:[#allocation2 + $0x64] sm:$0xf]
    %v71 = vld [vmem:[#allocation2 + $0x68] sm:$0xf]
    %v72 = vld [vmem:[#allocation2 + $0x6c] sm:$0x3]
    %v73 = vld [vmem:[#allocation2 + $0x70] sm:$0xf]
    %v74 = vld [vmem:[#allocation2 + $0x74] sm:$0xf]
    %v75 = vld [vmem:[#allocation2 + $0x78] sm:$0xf]
    %v76 = vld [vmem:[#allocation2 + $0x7c] sm:$0xf]
    %v77 = vld [vmem:[#allocation2 + $0x80] sm:$0xf]
    %v78 = vld [vmem:[#allocation2 + $0x84] sm:$0xf]
    %v79 = vld [vmem:[#allocation2 + $0x88] sm:$0xf]
    %v80 = vld [vmem:[#allocation2 + $0x8c] sm:$0xf]
    %v81 = vld [vmem:[#allocation2 + $0x90] sm:$0xf]
    %v82 = vld [vmem:[#allocation2 + $0x94] sm:$0xf]
    %v83 = vld [vmem:[#allocation2 + $0x98] sm:$0xf]
    %v84 = vld [vmem:[#allocation2 + $0x9c] sm:$0xf]
    %v85 = vld [vmem:[#allocation5] sm:$0xff]
    %v86 = vld [vmem:[#allocation5 + $0x8] sm:$0xff]
    %v87 = vld [vmem:[#allocation5 + $0x10] sm:$0xff]
    %v88 = vld [vmem:[#allocation5 + $0x18] sm:$0xff]
    %v89 = vld [vmem:[#allocation5 + $0x20] sm:$0x1]
    %v92 = vunpack.c.l.b16 %v44
    %v93 = vunpack.c.l.b16 %v45
    %v94 = vpack.c.b16 %v93, %v92
    %vm95 = vcmask 31744
    %v97 = vsel %vm95, %v94, 0
    %vm99 = vcmask 1041408
    %v101 = vsel %vm99, %v46, 0
    %103 = vmatprep.subr.bf16.mxu0 0
    %104 = vmatpush1.bf16.msra.mxu0 %v101
    %105 = vmatprep.subr.bf16.mxu0 0
    %106 = vmatpush1.bf16.msra.mxu0 0
    %107 = vmatprep.subr.bf16.mxu0 0
    %108 = vmatpush1.bf16.msra.mxu0 0
    %109 = vmatprep.subr.bf16.mxu0 0
    %110 = vmatpush1.bf16.msra.mxu0 0
    %111 = vmatprep.subr.bf16.mxu0 0
    %112 = vmatpush1.bf16.msra.mxu0 0
    %113 = vmatprep.subr.bf16.mxu0 0
    %114 = vmatpush1.bf16.msra.mxu0 0
    %115 = vmatprep.subr.bf16.mxu0 0
    %116 = vmatpush1.bf16.msra.mxu0 0
    %117 = vmatprep.subr.bf16.mxu0 0
    %118 = vmatpush1.bf16.msra.mxu0 0
    %119 = vmatprep.subr.bf16.mxu0 0
    %120 = vmatpush1.bf16.msra.mxu0 0
    %121 = vmatprep.subr.bf16.mxu0 0
    %122 = vmatpush1.bf16.msra.mxu0 0
    %123 = vmatprep.subr.bf16.mxu0 0
    %124 = vmatpush1.bf16.msra.mxu0 0
    %125 = vmatprep.subr.bf16.mxu0 0
    %126 = vmatpush1.bf16.msra.mxu0 0
    %127 = vmatprep.subr.bf16.mxu0 0
    %128 = vmatpush1.bf16.msra.mxu0 0
    %129 = vmatprep.subr.bf16.mxu0 0
    %130 = vmatpush1.bf16.msra.mxu0 0
    %131 = vmatprep.subr.bf16.mxu0 0
    %132 = vmatpush1.bf16.msra.mxu0 0
    %133 = vmatprep.subr.bf16.mxu0 0
    %134 = vmatpush1.bf16.msra.mxu0 0
    %135 = vmatprep.mubr.bf16.mxu0 0
    %136 = vmatmul.mubr.bf16.gmra.mrb[0].mxu0 %v97
    %v137 = vpop.f32.mrb[0].mxu0
    %v138 = vadd.f32 0.0, %v137
    %v139 = vpop.f32.mrb[0].mxu0
    %v140 = vpop.f32.mrb[0].mxu0
    %v141 = vadd.f32 0.0, %v140
    %v142 = vpop.f32.mrb[0].mxu0
    %143 = vdwg.mxu0
    %v144 = vpack.c.bf16 %v141, %v138
    %v153 = vunpack.c.l.b16 %v63
    %v154 = vunpack.c.l.b16 %v64
    %v155 = vunpack.c.l.b16 %v65
    %v156 = vunpack.c.l.b16 %v66
    %v157 = vunpack.c.l.b16 %v67
    %v158 = vunpack.c.l.b16 %v68
    %v159 = vunpack.c.l.b16 %v69
    %v160 = vunpack.c.l.b16 %v70
    %v161 = vpack.c.b16 %v154, %v153
    %v162 = vpack.c.b16 %v156, %v155
    %v163 = vpack.c.b16 %v158, %v157
    %v164 = vpack.c.b16 %v160, %v159
    %vm165 = vcmask 130048
    %v167 = vsel %vm165, %v161, 0
    %v170 = vsel %vm165, %v162, 0
    %v173 = vsel %vm165, %v163, 0
    %v176 = vsel %vm165, %v164, 0
    %178 = vmatprep.subr.bf16.mxu0 0
    %179 = vmatpush1.bf16.msra.mxu0 %v144
    %180 = vmatprep.subr.bf16.mxu0 0
    %181 = vmatpush1.bf16.msra.mxu0 0
    %182 = vmatprep.subr.bf16.mxu0 0
    %183 = vmatpush1.bf16.msra.mxu0 0
    %184 = vmatprep.subr.bf16.mxu0 0
    %185 = vmatpush1.bf16.msra.mxu0 0
    %186 = vmatprep.subr.bf16.mxu0 0
    %187 = vmatpush1.bf16.msra.mxu0 0
    %188 = vmatprep.subr.bf16.mxu0 0
    %189 = vmatpush1.bf16.msra.mxu0 0
    %190 = vmatprep.subr.bf16.mxu0 0
    %191 = vmatpush1.bf16.msra.mxu0 0
    %192 = vmatprep.subr.bf16.mxu0 0
    %193 = vmatpush1.bf16.msra.mxu0 0
    %194 = vmatprep.subr.bf16.mxu0 0
    %195 = vmatpush1.bf16.msra.mxu0 0
    %196 = vmatprep.subr.bf16.mxu0 0
    %197 = vmatpush1.bf16.msra.mxu0 0
    %198 = vmatprep.subr.bf16.mxu0 0
    %199 = vmatpush1.bf16.msra.mxu0 0
    %200 = vmatprep.subr.bf16.mxu0 0
    %201 = vmatpush1.bf16.msra.mxu0 0
    %202 = vmatprep.subr.bf16.mxu0 0
    %203 = vmatpush1.bf16.msra.mxu0 0
    %204 = vmatprep.subr.bf16.mxu0 0
    %205 = vmatpush1.bf16.msra.mxu0 0
    %206 = vmatprep.subr.bf16.mxu0 0
    %207 = vmatpush1.bf16.msra.mxu0 0
    %208 = vmatprep.subr.bf16.mxu0 0
    %209 = vmatpush1.bf16.msra.mxu0 0
    %210 = vmatprep.mubr.bf16.mxu0 0
    %211 = vmatmul.mubr.bf16.gmra.mrb[0].mxu0 %v167
    %v212 = vpop.f32.mrb[0].mxu0
    %v213 = vadd.f32 0.0, %v212
    %v214 = vpop.f32.mrb[0].mxu0
    %v215 = vpop.f32.mrb[0].mxu0
    %v216 = vadd.f32 0.0, %v215
    %v217 = vpop.f32.mrb[0].mxu0
    %218 = vmatprep.mubr.bf16.mxu0 0
    %219 = vmatmul.mubr.bf16.gmra.mrb[0].mxu0 %v170
    %v220 = vpop.f32.mrb[0].mxu0
    %v221 = vadd.f32 0.0, %v220
    %v222 = vpop.f32.mrb[0].mxu0
    %v223 = vpop.f32.mrb[0].mxu0
    %v224 = vadd.f32 0.0, %v223
    %v225 = vpop.f32.mrb[0].mxu0
    %226 = vmatprep.mubr.bf16.mxu0 0
    %227 = vmatmul.mubr.bf16.gmra.mrb[0].mxu0 %v173
    %v228 = vpop.f32.mrb[0].mxu0
    %v229 = vadd.f32 0.0, %v228
    %v230 = vpop.f32.mrb[0].mxu0
    %v231 = vpop.f32.mrb[0].mxu0
    %v232 = vadd.f32 0.0, %v231
    %v233 = vpop.f32.mrb[0].mxu0
    %234 = vmatprep.mubr.bf16.mxu0 0
    %235 = vmatmul.mubr.bf16.gmra.mrb[0].mxu0 %v176
    %v236 = vpop.f32.mrb[0].mxu0
    %v237 = vadd.f32 0.0, %v236
    %v238 = vpop.f32.mrb[0].mxu0
    %v239 = vpop.f32.mrb[0].mxu0
    %v240 = vadd.f32 0.0, %v239
    %v241 = vpop.f32.mrb[0].mxu0
    %242 = vdwg.mxu0
    %v243 = vpack.c.bf16 %v216, %v213
    %v244 = vpack.c.bf16 %v224, %v221
    %v245 = vpack.c.bf16 %v232, %v229
    %v246 = vpack.c.bf16 %v240, %v237
    %v255 = vunpack.c.l.b16 %v55
    %v256 = vunpack.c.l.b16 %v56
    %v257 = vunpack.c.l.b16 %v57
    %v258 = vunpack.c.l.b16 %v58
    %v259 = vunpack.c.l.b16 %v59
    %v260 = vunpack.c.l.b16 %v60
    %v261 = vunpack.c.l.b16 %v61
    %v262 = vunpack.c.l.b16 %v62
    %v263 = vpack.c.b16 %v256, %v255
    %v264 = vpack.c.b16 %v258, %v257
    %v265 = vpack.c.b16 %v260, %v259
    %v266 = vpack.c.b16 %v262, %v261
    %vm271 = vcmask 523264
    %v273 = vsel %vm271, %v245, 0
    %v276 = vsel %vm271, %v246, 0
    %278 = vmatprep.subr.bf16.mxu0 0
    %279 = vmatpush1.bf16.msra.mxu0 %v263
    %280 = vmatprep.subr.bf16.mxu0 0
    %281 = vmatpush1.bf16.msra.mxu0 %v264
    %282 = vmatprep.subr.bf16.mxu0 0
    %283 = vmatpush1.bf16.msra.mxu0 %v265
    %284 = vmatprep.subr.bf16.mxu0 0
    %285 = vmatpush1.bf16.msra.mxu0 %v266
    %286 = vmatprep.subr.bf16.mxu0 0
    %287 = vmatpush1.bf16.msra.mxu0 0
    %288 = vmatprep.subr.bf16.mxu0 0
    %289 = vmatpush1.bf16.msra.mxu0 0
    %290 = vmatprep.subr.bf16.mxu0 0
    %291 = vmatpush1.bf16.msra.mxu0 0
    %292 = vmatprep.subr.bf16.mxu0 0
    %293 = vmatpush1.bf16.msra.mxu0 0
    %294 = vmatprep.subr.bf16.mxu0 0
    %295 = vmatpush1.bf16.msra.mxu0 0
    %296 = vmatprep.subr.bf16.mxu0 0
    %297 = vmatpush1.bf16.msra.mxu0 0
    %298 = vmatprep.subr.bf16.mxu0 0
    %299 = vmatpush1.bf16.msra.mxu0 0
    %300 = vmatprep.subr.bf16.mxu0 0
    %301 = vmatpush1.bf16.msra.mxu0 0
    %302 = vmatprep.subr.bf16.mxu0 0
    %303 = vmatpush1.bf16.msra.mxu0 0
    %304 = vmatprep.subr.bf16.mxu0 0
    %305 = vmatpush1.bf16.msra.mxu0 0
    %306 = vmatprep.subr.bf16.mxu0 0
    %307 = vmatpush1.bf16.msra.mxu0 0
    %308 = vmatprep.subr.bf16.mxu0 0
    %309 = vmatpush1.bf16.msra.mxu0 0
    %310 = vmatprep.mubr.bf16.mxu0 0
    %311 = vmatmul.mubr.bf16.gmra.mrb[0].mxu0 %v273
    %v312 = vpop.f32.mrb[0].mxu0
    %v313 = vadd.f32 0.0, %v312
    %v314 = vpop.f32.mrb[0].mxu0
    %v315 = vpop.f32.mrb[0].mxu0
    %v316 = vadd.f32 0.0, %v315
    %v317 = vpop.f32.mrb[0].mxu0
    %318 = vmatprep.mubr.bf16.mxu0 0
    %319 = vmatmul.mubr.bf16.gmra.mrb[0].mxu0 %v276
    %v320 = vpop.f32.mrb[0].mxu0
    %v321 = vadd.f32 0.0, %v320
    %v322 = vpop.f32.mrb[0].mxu0
    %v323 = vpop.f32.mrb[0].mxu0
    %v324 = vadd.f32 0.0, %v323
    %v325 = vpop.f32.mrb[0].mxu0
    %326 = vdwg.mxu0
    %v335 = vunpack.c.l.b16 %v47
    %v336 = vunpack.c.l.b16 %v48
    %v337 = vunpack.c.l.b16 %v49
    %v338 = vunpack.c.l.b16 %v50
    %v339 = vunpack.c.l.b16 %v51
    %v340 = vunpack.c.l.b16 %v52
    %v341 = vunpack.c.l.b16 %v53
    %v342 = vunpack.c.l.b16 %v54
    %v343 = vpack.c.b16 %v336, %v335
    %v344 = vpack.c.b16 %v338, %v337
    %v345 = vpack.c.b16 %v340, %v339
    %v346 = vpack.c.b16 %v342, %v341
    %v352 = vsel %vm271, %v243, 0
    %v355 = vsel %vm271, %v244, 0
    %357 = vmatprep.subr.bf16.mxu0 0
    %358 = vmatpush1.bf16.msra.mxu0 %v343
    %359 = vmatprep.subr.bf16.mxu0 0
    %360 = vmatpush1.bf16.msra.mxu0 %v344
    %361 = vmatprep.subr.bf16.mxu0 0
    %362 = vmatpush1.bf16.msra.mxu0 %v345
    %363 = vmatprep.subr.bf16.mxu0 0
    %364 = vmatpush1.bf16.msra.mxu0 %v346
    %365 = vmatprep.subr.bf16.mxu0 0
    %366 = vmatpush1.bf16.msra.mxu0 0
    %367 = vmatprep.subr.bf16.mxu0 0
    %368 = vmatpush1.bf16.msra.mxu0 0
    %369 = vmatprep.subr.bf16.mxu0 0
    %370 = vmatpush1.bf16.msra.mxu0 0
    %371 = vmatprep.subr.bf16.mxu0 0
    %372 = vmatpush1.bf16.msra.mxu0 0
    %373 = vmatprep.subr.bf16.mxu0 0
    %374 = vmatpush1.bf16.msra.mxu0 0
    %375 = vmatprep.subr.bf16.mxu0 0
    %376 = vmatpush1.bf16.msra.mxu0 0
    %377 = vmatprep.subr.bf16.mxu0 0
    %378 = vmatpush1.bf16.msra.mxu0 0
    %379 = vmatprep.subr.bf16.mxu0 0
    %380 = vmatpush1.bf16.msra.mxu0 0
    %381 = vmatprep.subr.bf16.mxu0 0
    %382 = vmatpush1.bf16.msra.mxu0 0
    %383 = vmatprep.subr.bf16.mxu0 0
    %384 = vmatpush1.bf16.msra.mxu0 0
    %385 = vmatprep.subr.bf16.mxu0 0
    %386 = vmatpush1.bf16.msra.mxu0 0
    %387 = vmatprep.subr.bf16.mxu0 0
    %388 = vmatpush1.bf16.msra.mxu0 0
    %389 = vmatprep.mubr.bf16.mxu0 0
    %390 = vmatmul.mubr.bf16.gmra.mrb[0].mxu0 %v352
    %v391 = vpop.f32.mrb[0].mxu0
    %v392 = vadd.f32 %v313, %v391
    %v393 = vpop.f32.mrb[0].mxu0
    %v394 = vpop.f32.mrb[0].mxu0
    %v395 = vadd.f32 %v316, %v394
    %v396 = vpop.f32.mrb[0].mxu0
    %397 = vmatprep.mubr.bf16.mxu0 0
    %398 = vmatmul.mubr.bf16.gmra.mrb[0].mxu0 %v355
    %v399 = vpop.f32.mrb[0].mxu0
    %v400 = vadd.f32 %v321, %v399
    %v401 = vpop.f32.mrb[0].mxu0
    %v402 = vpop.f32.mrb[0].mxu0
    %v403 = vadd.f32 %v324, %v402
    %v404 = vpop.f32.mrb[0].mxu0
    %405 = vdwg.mxu0
    %v406 = vmul.f32 %v392, %v85
    %v407 = vmul.f32 %v395, %v86
    %v408 = vmul.f32 %v400, %v87
    %v409 = vmul.f32 %v403, %v88
    %vm410 = vcmp.gt.f32.partialorder %v406, 0.0
    %vm411 = vcmp.gt.f32.partialorder %v407, 0.0
    %vm412 = vcmp.gt.f32.partialorder %v408, 0.0
    %vm413 = vcmp.gt.f32.partialorder %v409, 0.0
    %v414 = vmul.f32 %v406, 0.2
    %v415 = vmul.f32 %v407, 0.2
    %v416 = vmul.f32 %v408, 0.2
    %v417 = vmul.f32 %v409, 0.2
    %v418 = vsel %vm410, %v406, %v414
    %v419 = vsel %vm411, %v407, %v415
    %v420 = vsel %vm412, %v408, %v416
    %v421 = vsel %vm413, %v409, %v417
    %v422 = vsel %vm271, %v418, -inf
    %v423 = vsel %vm271, %v419, -inf
    %v424 = vsel %vm271, %v420, -inf
    %v425 = vsel %vm271, %v421, -inf
    %v426 = vmax.f32 %v422, %v423
    %v427 = vmax.f32 %v424, %v425
    %v428 = vmax.f32 %v426, %v427
    %429 = vmax.xlane.f32.xlu0 %v428
    %v430 = vpop.xlane.xlu0 %429
    %v431 = vrot.slane %v430, 4
    %v432 = vmax.f32 %v430, %v431
    %v433 = vrot.slane %v432, 2
    %v434 = vmax.f32 %v432, %v433
    %v435 = vrot.slane %v434, 1
    %v436 = vmax.f32 %v434, %v435
    %s437 = vtos %v436
    %v438 = vstv %s437
    %v439 = vsub.f32 %v418, %v438
    %v440 = vsub.f32 %v419, %v438
    %v441 = vsub.f32 %v420, %v438
    %v442 = vsub.f32 %v421, %v438
    %v443 = vmul.f32 %v439, 1.442695
    %v444 = vpow.pop %v443
    %v445 = vmul.f32 %v440, 1.442695
    %v446 = vpow.pop %v445
    %v447 = vmul.f32 %v441, 1.442695
    %v448 = vpow.pop %v447
    %v449 = vmul.f32 %v442, 1.442695
    %v450 = vpow.pop %v449
    %v451 = vpack.c.bf16 %v446, %v444
    %v452 = vpack.c.bf16 %v450, %v448
    %v457 = vunpack.c.l.b16 %v73
    %v458 = vunpack.c.l.b16 %v74
    %v459 = vunpack.c.l.b16 %v75
    %v460 = vunpack.c.l.b16 %v76
    %v461 = vpack.c.b16 %v458, %v457
    %v462 = vpack.c.b16 %v460, %v459
    %vm463 = vcmask 261120
    %v465 = vsel %vm463, %v461, 0
    %v468 = vsel %vm463, %v462, 0
    %470 = vmatprep.subr.bf16.mxu0 0
    %471 = vmatpush1.bf16.msra.mxu0 %v451
    %472 = vmatprep.subr.bf16.mxu0 0
    %473 = vmatpush1.bf16.msra.mxu0 %v452
    %474 = vmatprep.subr.bf16.mxu0 0
    %475 = vmatpush1.bf16.msra.mxu0 0
    %476 = vmatprep.subr.bf16.mxu0 0
    %477 = vmatpush1.bf16.msra.mxu0 0
    %478 = vmatprep.subr.bf16.mxu0 0
    %479 = vmatpush1.bf16.msra.mxu0 0
    %480 = vmatprep.subr.bf16.mxu0 0
    %481 = vmatpush1.bf16.msra.mxu0 0
    %482 = vmatprep.subr.bf16.mxu0 0
    %483 = vmatpush1.bf16.msra.mxu0 0
    %484 = vmatprep.subr.bf16.mxu0 0
    %485 = vmatpush1.bf16.msra.mxu0 0
    %486 = vmatprep.subr.bf16.mxu0 0
    %487 = vmatpush1.bf16.msra.mxu0 0
    %488 = vmatprep.subr.bf16.mxu0 0
    %489 = vmatpush1.bf16.msra.mxu0 0
    %490 = vmatprep.subr.bf16.mxu0 0
    %491 = vmatpush1.bf16.msra.mxu0 0
    %492 = vmatprep.subr.bf16.mxu0 0
    %493 = vmatpush1.bf16.msra.mxu0 0
    %494 = vmatprep.subr.bf16.mxu0 0
    %495 = vmatpush1.bf16.msra.mxu0 0
    %496 = vmatprep.subr.bf16.mxu0 0
    %497 = vmatpush1.bf16.msra.mxu0 0
    %498 = vmatprep.subr.bf16.mxu0 0
    %499 = vmatpush1.bf16.msra.mxu0 0
    %500 = vmatprep.subr.bf16.mxu0 0
    %501 = vmatpush1.bf16.msra.mxu0 0
    %502 = vmatprep.mubr.bf16.mxu0 0
    %503 = vmatmul.mubr.bf16.gmra.mrb[0].mxu0 %v465
    %v504 = vpop.f32.mrb[0].mxu0
    %v505 = vadd.f32 1e-16, %v504
    %v506 = vpop.f32.mrb[0].mxu0
    %v507 = vpop.f32.mrb[0].mxu0
    %v508 = vadd.f32 1e-16, %v507
    %v509 = vpop.f32.mrb[0].mxu0
    %510 = vmatprep.mubr.bf16.mxu0 0
    %511 = vmatmul.mubr.bf16.gmra.mrb[0].mxu0 %v468
    %v512 = vpop.f32.mrb[0].mxu0
    %v513 = vadd.f32 1e-16, %v512
    %v514 = vpop.f32.mrb[0].mxu0
    %v515 = vpop.f32.mrb[0].mxu0
    %v516 = vadd.f32 1e-16, %v515
    %v517 = vpop.f32.mrb[0].mxu0
    %518 = vdwg.mxu0
    %v519 = vrcp.pop %v505
    %v520 = vrcp.pop %v508
    %v521 = vrcp.pop %v513
    %v522 = vrcp.pop %v516
    %v523 = vmul.f32 %v444, %v519
    %v524 = vmul.f32 %v446, %v520
    %v525 = vmul.f32 %v448, %v521
    %v526 = vmul.f32 %v450, %v522
    %v527 = vmul.f32 %v229, %v523
    %v528 = vmul.f32 %v232, %v524
    %v529 = vmul.f32 %v237, %v525
    %v530 = vmul.f32 %v240, %v526
    %v531 = vpack.c.bf16 %v528, %v527
    %v532 = vpack.c.bf16 %v530, %v529
    %v535 = vunpack.c.l.b16 %v71
    %v536 = vunpack.c.l.b16 %v72
    %v537 = vpack.c.b16 %v536, %v535
    %v539 = vsel %vm463, %v537, 0
    %541 = vmatprep.subr.bf16.mxu0 0
    %542 = vmatpush1.bf16.msra.mxu0 %v531
    %543 = vmatprep.subr.bf16.mxu0 0
    %544 = vmatpush1.bf16.msra.mxu0 %v532
    %545 = vmatprep.subr.bf16.mxu0 0
    %546 = vmatpush1.bf16.msra.mxu0 0
    %547 = vmatprep.subr.bf16.mxu0 0
    %548 = vmatpush1.bf16.msra.mxu0 0
    %549 = vmatprep.subr.bf16.mxu0 0
    %550 = vmatpush1.bf16.msra.mxu0 0
    %551 = vmatprep.subr.bf16.mxu0 0
    %552 = vmatpush1.bf16.msra.mxu0 0
    %553 = vmatprep.subr.bf16.mxu0 0
    %554 = vmatpush1.bf16.msra.mxu0 0
    %555 = vmatprep.subr.bf16.mxu0 0
    %556 = vmatpush1.bf16.msra.mxu0 0
    %557 = vmatprep.subr.bf16.mxu0 0
    %558 = vmatpush1.bf16.msra.mxu0 0
    %559 = vmatprep.subr.bf16.mxu0 0
    %560 = vmatpush1.bf16.msra.mxu0 0
    %561 = vmatprep.subr.bf16.mxu0 0
    %562 = vmatpush1.bf16.msra.mxu0 0
    %563 = vmatprep.subr.bf16.mxu0 0
    %564 = vmatpush1.bf16.msra.mxu0 0
    %565 = vmatprep.subr.bf16.mxu0 0
    %566 = vmatpush1.bf16.msra.mxu0 0
    %567 = vmatprep.subr.bf16.mxu0 0
    %568 = vmatpush1.bf16.msra.mxu0 0
    %569 = vmatprep.subr.bf16.mxu0 0
    %570 = vmatpush1.bf16.msra.mxu0 0
    %571 = vmatprep.subr.bf16.mxu0 0
    %572 = vmatpush1.bf16.msra.mxu0 0
    %573 = vmatprep.mubr.bf16.mxu0 0
    %574 = vmatmul.mubr.bf16.gmra.mrb[0].mxu0 %v539
    %v575 = vpop.f32.mrb[0].mxu0
    %v576 = vadd.f32 0.0, %v575
    %v577 = vpop.f32.mrb[0].mxu0
    %v578 = vpop.f32.mrb[0].mxu0
    %v579 = vadd.f32 0.0, %v578
    %v580 = vpop.f32.mrb[0].mxu0
    %581 = vdwg.mxu0
    %v582 = vpack.c.bf16 %v579, %v576
    %v583 = vlaneseq
    %v584 = vshrl.u32 %v583, 7
    %v585 = vsub.s32 0, %v584
    %v586 = vrot.slane %v89, %v585
    %v595 = vunpack.c.l.b16 %v77
    %v596 = vunpack.c.l.b16 %v78
    %v597 = vunpack.c.l.b16 %v79
    %v598 = vunpack.c.l.b16 %v80
    %v599 = vunpack.c.l.b16 %v81
    %v600 = vunpack.c.l.b16 %v82
    %v601 = vunpack.c.l.b16 %v83
    %v602 = vunpack.c.l.b16 %v84
    %v603 = vpack.c.b16 %v596, %v595
    %v604 = vpack.c.b16 %v598, %v597
    %v605 = vpack.c.b16 %v600, %v599
    %v606 = vpack.c.b16 %v602, %v601
    %v612 = vsel %vm271, %v582, 0
    %614 = vmatprep.subr.bf16.mxu0 0
    %615 = vmatpush1.bf16.msra.mxu0 %v603
    %616 = vmatprep.subr.bf16.mxu0 0
    %617 = vmatpush1.bf16.msra.mxu0 %v604
    %618 = vmatprep.subr.bf16.mxu0 0
    %619 = vmatpush1.bf16.msra.mxu0 %v605
    %620 = vmatprep.subr.bf16.mxu0 0
    %621 = vmatpush1.bf16.msra.mxu0 %v606
    %622 = vmatprep.subr.bf16.mxu0 0
    %623 = vmatpush1.bf16.msra.mxu0 0
    %624 = vmatprep.subr.bf16.mxu0 0
    %625 = vmatpush1.bf16.msra.mxu0 0
    %626 = vmatprep.subr.bf16.mxu0 0
    %627 = vmatpush1.bf16.msra.mxu0 0
    %628 = vmatprep.subr.bf16.mxu0 0
    %629 = vmatpush1.bf16.msra.mxu0 0
    %630 = vmatprep.subr.bf16.mxu0 0
    %631 = vmatpush1.bf16.msra.mxu0 0
    %632 = vmatprep.subr.bf16.mxu0 0
    %633 = vmatpush1.bf16.msra.mxu0 0
    %634 = vmatprep.subr.bf16.mxu0 0
    %635 = vmatpush1.bf16.msra.mxu0 0
    %636 = vmatprep.subr.bf16.mxu0 0
    %637 = vmatpush1.bf16.msra.mxu0 0
    %638 = vmatprep.subr.bf16.mxu0 0
    %639 = vmatpush1.bf16.msra.mxu0 0
    %640 = vmatprep.subr.bf16.mxu0 0
    %641 = vmatpush1.bf16.msra.mxu0 0
    %642 = vmatprep.subr.bf16.mxu0 0
    %643 = vmatpush1.bf16.msra.mxu0 0
    %644 = vmatprep.subr.bf16.mxu0 0
    %645 = vmatpush1.bf16.msra.mxu0 0
    %646 = vmatprep.mubr.bf16.mxu0 0
    %647 = vmatmul.mubr.bf16.gmra.mrb[0].mxu0 %v612
    %v648 = vpop.f32.mrb[0].mxu0
    %v649 = vadd.f32 %v586, %v648
    %v650 = vpop.f32.mrb[0].mxu0
    %v651 = vpop.f32.mrb[0].mxu0
    %v652 = vadd.f32 %v586, %v651
    %v653 = vpop.f32.mrb[0].mxu0
    %654 = vdwg.mxu0
    %vm655 = vcmp.gt.f32.partialorder %v649, 0.0
    %vm656 = vcmp.gt.f32.partialorder %v652, 0.0
    %v657 = vmul.f32 %v649, 0.01
    %v658 = vmul.f32 %v652, 0.01
    %v659 = vsel %vm655, %v649, %v657
    %v660 = vsel %vm656, %v652, %v658
    %v661 = vpack.c.bf16 %v660, %v659
    %v662 = vld [vmem:[#allocation2 + $0xa0] sm:$0xf]
    %v663 = vld [vmem:[#allocation2 + $0xa4] sm:$0xf]
    %v664 = vld [vmem:[#allocation2 + $0xa8] sm:$0xf]
    %v665 = vld [vmem:[#allocation2 + $0xac] sm:$0xf]
    %v666 = vld [vmem:[#allocation2 + $0xb0] sm:$0xf]
    %v667 = vld [vmem:[#allocation2 + $0xb4] sm:$0xf]
    %v668 = vld [vmem:[#allocation2 + $0xb8] sm:$0xf]
    %v669 = vld [vmem:[#allocation2 + $0xbc] sm:$0xf]
    %v670 = vld [vmem:[#allocation2 + $0xc0] sm:$0xf]
    %v671 = vld [vmem:[#allocation2 + $0xc4] sm:$0xf]
    %v672 = vld [vmem:[#allocation2 + $0xc8] sm:$0xf]
    %v673 = vld [vmem:[#allocation2 + $0xcc] sm:$0xf]
    %v674 = vld [vmem:[#allocation2 + $0xd0] sm:$0xf]
    %v675 = vld [vmem:[#allocation2 + $0xd4] sm:$0xf]
    %v676 = vld [vmem:[#allocation2 + $0xd8] sm:$0xf]
    %v677 = vld [vmem:[#allocation2 + $0xdc] sm:$0xf]
    %v678 = vld [vmem:[#allocation2 + $0xe0] sm:$0xf]
    %v679 = vld [vmem:[#allocation2 + $0xe4] sm:$0xf]
    %v680 = vld [vmem:[#allocation2 + $0xe8] sm:$0xf]
    %v681 = vld [vmem:[#allocation2 + $0xf0] sm:$0xf]
    %v682 = vld [vmem:[#allocation2 + $0xf4] sm:$0xf]
    %v683 = vld [vmem:[#allocation2 + $0xf8] sm:$0xf]
    %v684 = vld [vmem:[#allocation2 + $0xfc] sm:$0xf]
    %v685 = vld [vmem:[#allocation2 + $0x100] sm:$0xf]
    %v686 = vld [vmem:[#allocation2 + $0x104] sm:$0xf]
    %v687 = vld [vmem:[#allocation2 + $0x108] sm:$0xf]
    %v688 = vld [vmem:[#allocation2 + $0x10c] sm:$0xf]
    %v689 = vld [vmem:[#allocation5 + $0x28] sm:$0xff]
    %v690 = vld [vmem:[#allocation5 + $0x30] sm:$0xff]
    %v691 = vld [vmem:[#allocation5 + $0x38] sm:$0xff]
    %v692 = vld [vmem:[#allocation5 + $0x40] sm:$0xff]
    %v693 = vld [vmem:[#allocation5 + $0x48] sm:$0x1]
    %v696 = vunpack.c.l.b16 %v662
    %v697 = vunpack.c.l.b16 %v663
    %v698 = vpack.c.b16 %v697, %v696
    %v701 = vsel %vm165, %v661, 0
    %703 = vmatprep.subr.bf16.mxu0 0
    %704 = vmatpush1.bf16.msra.mxu0 %v698
    %705 = vmatprep.subr.bf16.mxu0 0
    %706 = vmatpush1.bf16.msra.mxu0 0
    %707 = vmatprep.subr.bf16.mxu0 0
    %708 = vmatpush1.bf16.msra.mxu0 0
    %709 = vmatprep.subr.bf16.mxu0 0
    %710 = vmatpush1.bf16.msra.mxu0 0
    %711 = vmatprep.subr.bf16.mxu0 0
    %712 = vmatpush1.bf16.msra.mxu0 0
    %713 = vmatprep.subr.bf16.mxu0 0
    %714 = vmatpush1.bf16.msra.mxu0 0
    %715 = vmatprep.subr.bf16.mxu0 0
    %716 = vmatpush1.bf16.msra.mxu0 0
    %717 = vmatprep.subr.bf16.mxu0 0
    %718 = vmatpush1.bf16.msra.mxu0 0
    %719 = vmatprep.subr.bf16.mxu0 0
    %720 = vmatpush1.bf16.msra.mxu0 0
    %721 = vmatprep.subr.bf16.mxu0 0
    %722 = vmatpush1.bf16.msra.mxu0 0
    %723 = vmatprep.subr.bf16.mxu0 0
    %724 = vmatpush1.bf16.msra.mxu0 0
    %725 = vmatprep.subr.bf16.mxu0 0
    %726 = vmatpush1.bf16.msra.mxu0 0
    %727 = vmatprep.subr.bf16.mxu0 0
    %728 = vmatpush1.bf16.msra.mxu0 0
    %729 = vmatprep.subr.bf16.mxu0 0
    %730 = vmatpush1.bf16.msra.mxu0 0
    %731 = vmatprep.subr.bf16.mxu0 0
    %732 = vmatpush1.bf16.msra.mxu0 0
    %733 = vmatprep.subr.bf16.mxu0 0
    %734 = vmatpush1.bf16.msra.mxu0 0
    %735 = vmatprep.mubr.bf16.mxu0 0
    %736 = vmatmul.mubr.bf16.gmra.mrb[0].mxu0 %v701
    %v737 = vpop.f32.mrb[0].mxu0
    %v738 = vadd.f32 0.0, %v737
    %v739 = vpop.f32.mrb[0].mxu0
    %v740 = vpop.f32.mrb[0].mxu0
    %v741 = vadd.f32 0.0, %v740
    %v742 = vpop.f32.mrb[0].mxu0
    %743 = vdwg.mxu0
    %v744 = vpack.c.bf16 %v741, %v738
    %v753 = vunpack.c.l.b16 %v672
    %v754 = vunpack.c.l.b16 %v673
    %v755 = vunpack.c.l.b16 %v674
    %v756 = vunpack.c.l.b16 %v675
    %v757 = vunpack.c.l.b16 %v676
    %v758 = vunpack.c.l.b16 %v677
    %v759 = vunpack.c.l.b16 %v678
    %v760 = vunpack.c.l.b16 %v679
    %v761 = vpack.c.b16 %v754, %v753
    %v762 = vpack.c.b16 %v756, %v755
    %v763 = vpack.c.b16 %v758, %v757
    %v764 = vpack.c.b16 %v760, %v759
    %vm765 = vcmask 97280
    %v767 = vsel %vm765, %v761, 0
    %v770 = vsel %vm765, %v762, 0
    %v773 = vsel %vm765, %v763, 0
    %v776 = vsel %vm765, %v764, 0
    %vm778 = vcmask 1045504
    %v780 = vsel %vm778, %v744, 0
    %782 = vmatprep.subr.bf16.mxu0 0
    %783 = vmatpush1.bf16.msra.mxu0 %v780
    %784 = vmatprep.subr.bf16.mxu0 0
    %785 = vmatpush1.bf16.msra.mxu0 0
    %786 = vmatprep.subr.bf16.mxu0 0
    %787 = vmatpush1.bf16.msra.mxu0 0
    %788 = vmatprep.subr.bf16.mxu0 0
    %789 = vmatpush1.bf16.msra.mxu0 0
    %790 = vmatprep.subr.bf16.mxu0 0
    %791 = vmatpush1.bf16.msra.mxu0 0
    %792 = vmatprep.subr.bf16.mxu0 0
    %793 = vmatpush1.bf16.msra.mxu0 0
    %794 = vmatprep.subr.bf16.mxu0 0
    %795 = vmatpush1.bf16.msra.mxu0 0
    %796 = vmatprep.subr.bf16.mxu0 0
    %797 = vmatpush1.bf16.msra.mxu0 0
    %798 = vmatprep.subr.bf16.mxu0 0
    %799 = vmatpush1.bf16.msra.mxu0 0
    %800 = vmatprep.subr.bf16.mxu0 0
    %801 = vmatpush1.bf16.msra.mxu0 0
    %802 = vmatprep.subr.bf16.mxu0 0
    %803 = vmatpush1.bf16.msra.mxu0 0
    %804 = vmatprep.subr.bf16.mxu0 0
    %805 = vmatpush1.bf16.msra.mxu0 0
    %806 = vmatprep.subr.bf16.mxu0 0
    %807 = vmatpush1.bf16.msra.mxu0 0
    %808 = vmatprep.subr.bf16.mxu0 0
    %809 = vmatpush1.bf16.msra.mxu0 0
    %810 = vmatprep.subr.bf16.mxu0 0
    %811 = vmatpush1.bf16.msra.mxu0 0
    %812 = vmatprep.subr.bf16.mxu0 0
    %813 = vmatpush1.bf16.msra.mxu0 0
    %814 = vmatprep.mubr.bf16.mxu0 0
    %815 = vmatmul.mubr.bf16.gmra.mrb[0].mxu0 %v767
    %v816 = vpop.f32.mrb[0].mxu0
    %v817 = vadd.f32 0.0, %v816
    %v818 = vpop.f32.mrb[0].mxu0
    %v819 = vpop.f32.mrb[0].mxu0
    %v820 = vadd.f32 0.0, %v819
    %v821 = vpop.f32.mrb[0].mxu0
    %822 = vmatprep.mubr.bf16.mxu0 0
    %823 = vmatmul.mubr.bf16.gmra.mrb[0].mxu0 %v770
    %v824 = vpop.f32.mrb[0].mxu0
    %v825 = vadd.f32 0.0, %v824
    %v826 = vpop.f32.mrb[0].mxu0
    %v827 = vpop.f32.mrb[0].mxu0
    %v828 = vadd.f32 0.0, %v827
    %v829 = vpop.f32.mrb[0].mxu0
    %830 = vmatprep.mubr.bf16.mxu0 0
    %831 = vmatmul.mubr.bf16.gmra.mrb[0].mxu0 %v773
    %v832 = vpop.f32.mrb[0].mxu0
    %v833 = vadd.f32 0.0, %v832
    %v834 = vpop.f32.mrb[0].mxu0
    %v835 = vpop.f32.mrb[0].mxu0
    %v836 = vadd.f32 0.0, %v835
    %v837 = vpop.f32.mrb[0].mxu0
    %838 = vmatprep.mubr.bf16.mxu0 0
    %839 = vmatmul.mubr.bf16.gmra.mrb[0].mxu0 %v776
    %v840 = vpop.f32.mrb[0].mxu0
    %v841 = vadd.f32 0.0, %v840
    %v842 = vpop.f32.mrb[0].mxu0
    %v843 = vpop.f32.mrb[0].mxu0
    %v844 = vadd.f32 0.0, %v843
    %v845 = vpop.f32.mrb[0].mxu0
    %846 = vdwg.mxu0
    %v847 = vpack.c.bf16 %v820, %v817
    %v848 = vpack.c.bf16 %v828, %v825
    %v849 = vpack.c.bf16 %v836, %v833
    %v850 = vpack.c.bf16 %v844, %v841
    %v855 = vunpack.c.l.b16 %v668
    %v856 = vunpack.c.l.b16 %v669
    %v857 = vunpack.c.l.b16 %v670
    %v858 = vunpack.c.l.b16 %v671
    %v859 = vpack.c.b16 %v856, %v855
    %v860 = vpack.c.b16 %v858, %v857
    %v864 = vsel %vm463, %v849, 0
    %v867 = vsel %vm463, %v850, 0
    %869 = vmatprep.subr.bf16.mxu0 0
    %870 = vmatpush1.bf16.msra.mxu0 %v859
    %871 = vmatprep.subr.bf16.mxu0 0
    %872 = vmatpush1.bf16.msra.mxu0 %v860
    %873 = vmatprep.subr.bf16.mxu0 0
    %874 = vmatpush1.bf16.msra.mxu0 0
    %875 = vmatprep.subr.bf16.mxu0 0
    %876 = vmatpush1.bf16.msra.mxu0 0
    %877 = vmatprep.subr.bf16.mxu0 0
    %878 = vmatpush1.bf16.msra.mxu0 0
    %879 = vmatprep.subr.bf16.mxu0 0
    %880 = vmatpush1.bf16.msra.mxu0 0
    %881 = vmatprep.subr.bf16.mxu0 0
    %882 = vmatpush1.bf16.msra.mxu0 0
    %883 = vmatprep.subr.bf16.mxu0 0
    %884 = vmatpush1.bf16.msra.mxu0 0
    %885 = vmatprep.subr.bf16.mxu0 0
    %886 = vmatpush1.bf16.msra.mxu0 0
    %887 = vmatprep.subr.bf16.mxu0 0
    %888 = vmatpush1.bf16.msra.mxu0 0
    %889 = vmatprep.subr.bf16.mxu0 0
    %890 = vmatpush1.bf16.msra.mxu0 0
    %891 = vmatprep.subr.bf16.mxu0 0
    %892 = vmatpush1.bf16.msra.mxu0 0
    %893 = vmatprep.subr.bf16.mxu0 0
    %894 = vmatpush1.bf16.msra.mxu0 0
    %895 = vmatprep.subr.bf16.mxu0 0
    %896 = vmatpush1.bf16.msra.mxu0 0
    %897 = vmatprep.subr.bf16.mxu0 0
    %898 = vmatpush1.bf16.msra.mxu0 0
    %899 = vmatprep.subr.bf16.mxu0 0
    %900 = vmatpush1.bf16.msra.mxu0 0
    %901 = vmatprep.mubr.bf16.mxu0 0
    %902 = vmatmul.mubr.bf16.gmra.mrb[0].mxu0 %v864
    %v903 = vpop.f32.mrb[0].mxu0
    %v904 = vadd.f32 0.0, %v903
    %v905 = vpop.f32.mrb[0].mxu0
    %v906 = vpop.f32.mrb[0].mxu0
    %v907 = vadd.f32 0.0, %v906
    %v908 = vpop.f32.mrb[0].mxu0
    %909 = vmatprep.mubr.bf16.mxu0 0
    %910 = vmatmul.mubr.bf16.gmra.mrb[0].mxu0 %v867
    %v911 = vpop.f32.mrb[0].mxu0
    %v912 = vadd.f32 0.0, %v911
    %v913 = vpop.f32.mrb[0].mxu0
    %v914 = vpop.f32.mrb[0].mxu0
    %v915 = vadd.f32 0.0, %v914
    %v916 = vpop.f32.mrb[0].mxu0
    %917 = vdwg.mxu0
    %v922 = vunpack.c.l.b16 %v664
    %v923 = vunpack.c.l.b16 %v665
    %v924 = vunpack.c.l.b16 %v666
    %v925 = vunpack.c.l.b16 %v667
    %v926 = vpack.c.b16 %v923, %v922
    %v927 = vpack.c.b16 %v925, %v924
    %v931 = vsel %vm463, %v847, 0
    %v934 = vsel %vm463, %v848, 0
    %936 = vmatprep.subr.bf16.mxu0 0
    %937 = vmatpush1.bf16.msra.mxu0 %v926
    %938 = vmatprep.subr.bf16.mxu0 0
    %939 = vmatpush1.bf16.msra.mxu0 %v927
    %940 = vmatprep.subr.bf16.mxu0 0
    %941 = vmatpush1.bf16.msra.mxu0 0
    %942 = vmatprep.subr.bf16.mxu0 0
    %943 = vmatpush1.bf16.msra.mxu0 0
    %944 = vmatprep.subr.bf16.mxu0 0
    %945 = vmatpush1.bf16.msra.mxu0 0
    %946 = vmatprep.subr.bf16.mxu0 0
    %947 = vmatpush1.bf16.msra.mxu0 0
    %948 = vmatprep.subr.bf16.mxu0 0
    %949 = vmatpush1.bf16.msra.mxu0 0
    %950 = vmatprep.subr.bf16.mxu0 0
    %951 = vmatpush1.bf16.msra.mxu0 0
    %952 = vmatprep.subr.bf16.mxu0 0
    %953 = vmatpush1.bf16.msra.mxu0 0
    %954 = vmatprep.subr.bf16.mxu0 0
    %955 = vmatpush1.bf16.msra.mxu0 0
    %956 = vmatprep.subr.bf16.mxu0 0
    %957 = vmatpush1.bf16.msra.mxu0 0
    %958 = vmatprep.subr.bf16.mxu0 0
    %959 = vmatpush1.bf16.msra.mxu0 0
    %960 = vmatprep.subr.bf16.mxu0 0
    %961 = vmatpush1.bf16.msra.mxu0 0
    %962 = vmatprep.subr.bf16.mxu0 0
    %963 = vmatpush1.bf16.msra.mxu0 0
    %964 = vmatprep.subr.bf16.mxu0 0
    %965 = vmatpush1.bf16.msra.mxu0 0
    %966 = vmatprep.subr.bf16.mxu0 0
    %967 = vmatpush1.bf16.msra.mxu0 0
    %968 = vmatprep.mubr.bf16.mxu0 0
    %969 = vmatmul.mubr.bf16.gmra.mrb[0].mxu0 %v931
    %v970 = vpop.f32.mrb[0].mxu0
    %v971 = vadd.f32 %v904, %v970
    %v972 = vpop.f32.mrb[0].mxu0
    %v973 = vpop.f32.mrb[0].mxu0
    %v974 = vadd.f32 %v907, %v973
    %v975 = vpop.f32.mrb[0].mxu0
    %976 = vmatprep.mubr.bf16.mxu0 0
    %977 = vmatmul.mubr.bf16.gmra.mrb[0].mxu0 %v934
    %v978 = vpop.f32.mrb[0].mxu0
    %v979 = vadd.f32 %v912, %v978
    %v980 = vpop.f32.mrb[0].mxu0
    %v981 = vpop.f32.mrb[0].mxu0
    %v982 = vadd.f32 %v915, %v981
    %v983 = vpop.f32.mrb[0].mxu0
    %984 = vdwg.mxu0
    %v985 = vmul.f32 %v971, %v689
    %v986 = vmul.f32 %v974, %v690
    %v987 = vmul.f32 %v979, %v691
    %v988 = vmul.f32 %v982, %v692
    %vm989 = vcmp.gt.f32.partialorder %v985, 0.0
    %vm990 = vcmp.gt.f32.partialorder %v986, 0.0
    %vm991 = vcmp.gt.f32.partialorder %v987, 0.0
    %vm992 = vcmp.gt.f32.partialorder %v988, 0.0
    %v993 = vmul.f32 %v985, 0.2
    %v994 = vmul.f32 %v986, 0.2
    %v995 = vmul.f32 %v987, 0.2
    %v996 = vmul.f32 %v988, 0.2
    %v997 = vsel %vm989, %v985, %v993
    %v998 = vsel %vm990, %v986, %v994
    %v999 = vsel %vm991, %v987, %v995
    %v1000 = vsel %vm992, %v988, %v996
    %v1001 = vsel %vm463, %v997, -inf
    %v1002 = vsel %vm463, %v998, -inf
    %v1003 = vsel %vm463, %v999, -inf
    %v1004 = vsel %vm463, %v1000, -inf
    %v1005 = vmax.f32 %v1001, %v1002
    %v1006 = vmax.f32 %v1003, %v1004
    %v1007 = vmax.f32 %v1005, %v1006
    %1008 = vmax.xlane.f32.xlu0 %v1007
    %v1009 = vpop.xlane.xlu0 %1008
    %v1010 = vrot.slane %v1009, 4
    %v1011 = vmax.f32 %v1009, %v1010
    %v1012 = vrot.slane %v1011, 2
    %v1013 = vmax.f32 %v1011, %v1012
    %v1014 = vrot.slane %v1013, 1
    %v1015 = vmax.f32 %v1013, %v1014
    %s1016 = vtos %v1015
    %v1017 = vstv %s1016
    %v1018 = vsub.f32 %v997, %v1017
    %v1019 = vsub.f32 %v998, %v1017
    %v1020 = vsub.f32 %v999, %v1017
    %v1021 = vsub.f32 %v1000, %v1017
    %v1022 = vmul.f32 %v1018, 1.442695
    %v1023 = vpow.pop %v1022
    %v1024 = vmul.f32 %v1019, 1.442695
    %v1025 = vpow.pop %v1024
    %v1026 = vmul.f32 %v1020, 1.442695
    %v1027 = vpow.pop %v1026
    %v1028 = vmul.f32 %v1021, 1.442695
    %v1029 = vpow.pop %v1028
    %v1030 = vpack.c.bf16 %v1025, %v1023
    %v1031 = vpack.c.bf16 %v1029, %v1027
    %v1036 = vunpack.c.l.b16 %v681
    %v1037 = vunpack.c.l.b16 %v682
    %v1038 = vunpack.c.l.b16 %v683
    %v1039 = vunpack.c.l.b16 %v684
    %v1040 = vpack.c.b16 %v1037, %v1036
    %v1041 = vpack.c.b16 %v1039, %v1038
    %v1043 = vsel %vm463, %v1040, 0
    %v1046 = vsel %vm463, %v1041, 0
    %1048 = vmatprep.subr.bf16.mxu0 0
    %1049 = vmatpush1.bf16.msra.mxu0 %v1030
    %1050 = vmatprep.subr.bf16.mxu0 0
    %1051 = vmatpush1.bf16.msra.mxu0 %v1031
    %1052 = vmatprep.subr.bf16.mxu0 0
    %1053 = vmatpush1.bf16.msra.mxu0 0
    %1054 = vmatprep.subr.bf16.mxu0 0
    %1055 = vmatpush1.bf16.msra.mxu0 0
    %1056 = vmatprep.subr.bf16.mxu0 0
    %1057 = vmatpush1.bf16.msra.mxu0 0
    %1058 = vmatprep.subr.bf16.mxu0 0
    %1059 = vmatpush1.bf16.msra.mxu0 0
    %1060 = vmatprep.subr.bf16.mxu0 0
    %1061 = vmatpush1.bf16.msra.mxu0 0
    %1062 = vmatprep.subr.bf16.mxu0 0
    %1063 = vmatpush1.bf16.msra.mxu0 0
    %1064 = vmatprep.subr.bf16.mxu0 0
    %1065 = vmatpush1.bf16.msra.mxu0 0
    %1066 = vmatprep.subr.bf16.mxu0 0
    %1067 = vmatpush1.bf16.msra.mxu0 0
    %1068 = vmatprep.subr.bf16.mxu0 0
    %1069 = vmatpush1.bf16.msra.mxu0 0
    %1070 = vmatprep.subr.bf16.mxu0 0
    %1071 = vmatpush1.bf16.msra.mxu0 0
    %1072 = vmatprep.subr.bf16.mxu0 0
    %1073 = vmatpush1.bf16.msra.mxu0 0
    %1074 = vmatprep.subr.bf16.mxu0 0
    %1075 = vmatpush1.bf16.msra.mxu0 0
    %1076 = vmatprep.subr.bf16.mxu0 0
    %1077 = vmatpush1.bf16.msra.mxu0 0
    %1078 = vmatprep.subr.bf16.mxu0 0
    %1079 = vmatpush1.bf16.msra.mxu0 0
    %1080 = vmatprep.mubr.bf16.mxu0 0
    %1081 = vmatmul.mubr.bf16.gmra.mrb[0].mxu0 %v1043
    %v1082 = vpop.f32.mrb[0].mxu0
    %v1083 = vadd.f32 1e-16, %v1082
    %v1084 = vpop.f32.mrb[0].mxu0
    %v1085 = vpop.f32.mrb[0].mxu0
    %v1086 = vadd.f32 1e-16, %v1085
    %v1087 = vpop.f32.mrb[0].mxu0
    %1088 = vmatprep.mubr.bf16.mxu0 0
    %1089 = vmatmul.mubr.bf16.gmra.mrb[0].mxu0 %v1046
    %v1090 = vpop.f32.mrb[0].mxu0
    %v1091 = vadd.f32 1e-16, %v1090
    %v1092 = vpop.f32.mrb[0].mxu0
    %v1093 = vpop.f32.mrb[0].mxu0
    %v1094 = vadd.f32 1e-16, %v1093
    %v1095 = vpop.f32.mrb[0].mxu0
    %1096 = vdwg.mxu0
    %v1097 = vrcp.pop %v1083
    %v1098 = vrcp.pop %v1086
    %v1099 = vrcp.pop %v1091
    %v1100 = vrcp.pop %v1094
    %v1101 = vmul.f32 %v1023, %v1097
    %v1102 = vmul.f32 %v1025, %v1098
    %v1103 = vmul.f32 %v1027, %v1099
    %v1104 = vmul.f32 %v1029, %v1100
    %v1105 = vmul.f32 %v833, %v1101
    %v1106 = vmul.f32 %v836, %v1102
    %v1107 = vmul.f32 %v841, %v1103
    %v1108 = vmul.f32 %v844, %v1104
    %v1109 = vpack.c.bf16 %v1106, %v1105
    %v1110 = vpack.c.bf16 %v1108, %v1107
    %v1112 = vsel %vm463, %v680, 0
    %1114 = vmatprep.subr.bf16.mxu0 0
    %1115 = vmatpush1.bf16.msra.mxu0 %v1109
    %1116 = vmatprep.subr.bf16.mxu0 0
    %1117 = vmatpush1.bf16.msra.mxu0 %v1110
    %1118 = vmatprep.subr.bf16.mxu0 0
    %1119 = vmatpush1.bf16.msra.mxu0 0
    %1120 = vmatprep.subr.bf16.mxu0 0
    %1121 = vmatpush1.bf16.msra.mxu0 0
    %1122 = vmatprep.subr.bf16.mxu0 0
    %1123 = vmatpush1.bf16.msra.mxu0 0
    %1124 = vmatprep.subr.bf16.mxu0 0
    %1125 = vmatpush1.bf16.msra.mxu0 0
    %1126 = vmatprep.subr.bf16.mxu0 0
    %1127 = vmatpush1.bf16.msra.mxu0 0
    %1128 = vmatprep.subr.bf16.mxu0 0
    %1129 = vmatpush1.bf16.msra.mxu0 0
    %1130 = vmatprep.subr.bf16.mxu0 0
    %1131 = vmatpush1.bf16.msra.mxu0 0
    %1132 = vmatprep.subr.bf16.mxu0 0
    %1133 = vmatpush1.bf16.msra.mxu0 0
    %1134 = vmatprep.subr.bf16.mxu0 0
    %1135 = vmatpush1.bf16.msra.mxu0 0
    %1136 = vmatprep.subr.bf16.mxu0 0
    %1137 = vmatpush1.bf16.msra.mxu0 0
    %1138 = vmatprep.subr.bf16.mxu0 0
    %1139 = vmatpush1.bf16.msra.mxu0 0
    %1140 = vmatprep.subr.bf16.mxu0 0
    %1141 = vmatpush1.bf16.msra.mxu0 0
    %1142 = vmatprep.subr.bf16.mxu0 0
    %1143 = vmatpush1.bf16.msra.mxu0 0
    %1144 = vmatprep.subr.bf16.mxu0 0
    %1145 = vmatpush1.bf16.msra.mxu0 0
    %1146 = vmatprep.mubr.bf16.mxu0 0
    %1147 = vmatmul.mubr.bf16.gmra.mrb[0].mxu0 %v1112
    %v1148 = vpop.f32.mrb[0].mxu0
    %v1149 = vadd.f32 0.0, %v1148
    %v1150 = vpop.f32.mrb[0].mxu0
    %v1151 = vpop.f32.mrb[0].mxu0
    %v1152 = vpop.f32.mrb[0].mxu0
    %1153 = vdwg.mxu0
    %v1154 = vpack.c.bf16 %v1149, %v1149
    %v1155 = vlaneseq
    %v1156 = vshrl.u32 %v1155, 7
    %v1157 = vsub.s32 0, %v1156
    %v1158 = vrot.slane %v693, %v1157
    %v1163 = vunpack.c.l.b16 %v685
    %v1164 = vunpack.c.l.b16 %v686
    %v1165 = vunpack.c.l.b16 %v687
    %v1166 = vunpack.c.l.b16 %v688
    %v1167 = vpack.c.b16 %v1164, %v1163
    %v1168 = vpack.c.b16 %v1166, %v1165
    %v1172 = vsel %vm463, %v1154, 0
    %1174 = vmatprep.subr.bf16.mxu0 0
    %1175 = vmatpush1.bf16.msra.mxu0 %v1167
    %1176 = vmatprep.subr.bf16.mxu0 0
    %1177 = vmatpush1.bf16.msra.mxu0 %v1168
    %1178 = vmatprep.subr.bf16.mxu0 0
    %1179 = vmatpush1.bf16.msra.mxu0 0
    %1180 = vmatprep.subr.bf16.mxu0 0
    %1181 = vmatpush1.bf16.msra.mxu0 0
    %1182 = vmatprep.subr.bf16.mxu0 0
    %1183 = vmatpush1.bf16.msra.mxu0 0
    %1184 = vmatprep.subr.bf16.mxu0 0
    %1185 = vmatpush1.bf16.msra.mxu0 0
    %1186 = vmatprep.subr.bf16.mxu0 0
    %1187 = vmatpush1.bf16.msra.mxu0 0
    %1188 = vmatprep.subr.bf16.mxu0 0
    %1189 = vmatpush1.bf16.msra.mxu0 0
    %1190 = vmatprep.subr.bf16.mxu0 0
    %1191 = vmatpush1.bf16.msra.mxu0 0
    %1192 = vmatprep.subr.bf16.mxu0 0
    %1193 = vmatpush1.bf16.msra.mxu0 0
    %1194 = vmatprep.subr.bf16.mxu0 0
    %1195 = vmatpush1.bf16.msra.mxu0 0
    %1196 = vmatprep.subr.bf16.mxu0 0
    %1197 = vmatpush1.bf16.msra.mxu0 0
    %1198 = vmatprep.subr.bf16.mxu0 0
    %1199 = vmatpush1.bf16.msra.mxu0 0
    %1200 = vmatprep.subr.bf16.mxu0 0
    %1201 = vmatpush1.bf16.msra.mxu0 0
    %1202 = vmatprep.subr.bf16.mxu0 0
    %1203 = vmatpush1.bf16.msra.mxu0 0
    %1204 = vmatprep.subr.bf16.mxu0 0
    %1205 = vmatpush1.bf16.msra.mxu0 0
    %1206 = vmatprep.mubr.bf16.mxu0 0
    %1207 = vmatmul.mubr.bf16.gmra.mrb[0].mxu0 %v1172
    %v1208 = vpop.f32.mrb[0].mxu0
    %v1209 = vadd.f32 %v1158, %v1208
    %v1210 = vpop.f32.mrb[0].mxu0
    %v1211 = vpop.f32.mrb[0].mxu0
    %v1212 = vpop.f32.mrb[0].mxu0
    %1213 = vdwg.mxu0
    %vm1214 = vcmp.gt.f32.partialorder %v1209, 0.0
    %v1215 = vmul.f32 %v1209, 0.01
    %v1216 = vsel %vm1214, %v1209, %v1215
    %1217 = vst [vmem:[#allocation7] sm:$0xff] %v1216
    // Predicated region
    $region22: #{fwd.1} parent=1 // pred_check
      _
    $region23: #{fwd.1} parent=1 // pred_check_branch
      %1219 = sbr.rel (0) target = $region25
    $region24: #{fwd.1} parent=1 // pred_region
      %s1221 = ssub.s32 128, 128
      %1222 = vsyncadd [#allocation4], %s1221
      %s1224 = sshll.u32 [#allocation7], 4
      %s1225 = int_to_ptr.vmem [resolvable:$true] %s1224
      %1227 = dma.vmem_to_hbm [thread:$0]  %s1225, 128, %s3, [#allocation4]
    $region25: #{fwd.1} parent=1 // pred_fallthru
      _
    // Predicated region
    $region26: #{fwd.1} parent=1 // pred_check
      _
    $region27: #{fwd.1} parent=1 // pred_check_branch
      %1229 = sbr.rel (0) target = $region29
    $region28: #{fwd.1} parent=1 // pred_region
      %1230 = dma.done [#allocation4], 128
    $region29: #{fwd.1} parent=1 // pred_fallthru
      _
    %1231 = vsyncpa [#allocation3], 1
    %1232 = vsyncpa [#allocation6], 1
    %1233 = vsyncpa [#allocation4], 1

</llo_original>
